<compile_context>
chip_gen: v7x
topology: tpu7x:2x2x1
jax: 0.10.0
libtpu: 0.0.40
codegen_flags: <defaults>
</compile_context>

<pallas_src>
import functools

import jax
import jax.numpy as jnp
from jax.experimental import pallas as pl
from jax.experimental.pallas import tpu as pltpu

_LANE = 128      # lane quantum (last dim)
_SUBLANE = 8     # f32 sublane quantum (second-to-last dim)


def _round_up(n, m):
    return ((n + m - 1) // m) * m


# ----------------------------------------------------------------------------
# Fused kernel: the entire Linear(+bias)+act chain for one batch tile.
# ----------------------------------------------------------------------------
def _encoder_kernel(*refs, num_layers, act):
    # refs = (x_ref, w0, b0, w1, b1, ..., w_{L-1}, b_{L-1}, o_ref)
    # x_ref : (tile_b, d_pad[0])          f32 zero-padded activations
    # w_i   : (d_pad[i], d_pad[i+1])      f32 or bf16, zero-padded
    # b_i   : (1, d_pad[i+1])             f32, zero-padded, broadcast in-kernel
    # o_ref : (tile_b, d_pad[L])          f32
    x_ref = refs[0]
    o_ref = refs[-1]
    wb = refs[1:-1]

    h = x_ref[...]
    for li in range(num_layers):            # static unroll — L is tiny
        w_ref = wb[2 * li]
        b_ref = wb[2 * li + 1]
        lhs = h if w_ref.dtype == jnp.float32 else h.astype(w_ref.dtype)
        h = jnp.dot(lhs, w_ref[...], preferred_element_type=jnp.float32)
        h = h + b_ref[...]                   # (1,F) broadcast over sublanes
        if act == "relu":
            h = jnp.maximum(h, 0.0)
        elif act == "tanh":
            h = jnp.tanh(h)
        else:
            raise ValueError(f"unsupported act_fn: {act}")
    o_ref[...] = h.astype(o_ref.dtype)


# ----------------------------------------------------------------------------
# One-time parameter packing (hoisted out of the jitted forward).
# ----------------------------------------------------------------------------
def pack_encoder_params(params, weight_dtype=jnp.float32):
    """Zero-pad each layer's (w, b) to per-layer lane-aligned shapes."""
    dims = [int(params[0][0].shape[0])] + [int(w.shape[1]) for w, _ in params]
    d_pad = [_round_up(d, _LANE) for d in dims]
    ws, bs = [], []
    for li, (w, b) in enumerate(params):
        fin, fout = w.shape
        wp = jnp.zeros((d_pad[li], d_pad[li + 1]), weight_dtype)
        wp = wp.at[:fin, :fout].set(w.astype(weight_dtype))
        bp = jnp.zeros((1, d_pad[li + 1]), jnp.float32)
        bp = bp.at[0, :fout].set(b.reshape(-1).astype(jnp.float32))
        ws.append(wp)
        bs.append(bp)
    return tuple(ws), tuple(bs)


# ----------------------------------------------------------------------------
# Forward pass: pad activations, one fused pallas_call with a batch grid.
# ----------------------------------------------------------------------------
def _encoder_apply(x, packed, *, dims, act, batch_tile):
    ws, bs = packed
    num_layers = len(ws)
    d_pad = [_round_up(d, _LANE) for d in dims]

    B = x.shape[0]
    h = x.astype(jnp.float32).reshape(B, -1)        # nn.Flatten on x.float()
    assert h.shape[1] == dims[0], (h.shape, dims)

    # Batch tiling: small batches -> single tile; large batches -> stream
    # `batch_tile`-row tiles (bounded VMEM, pipelined DMA, megacore on v7x).
    b_min = _round_up(max(B, _SUBLANE), _SUBLANE)
    tile_b = b_min if b_min <= batch_tile else batch_tile
    b_pad = _round_up(B, tile_b)
    grid = (b_pad // tile_b,)

    # Only the activations are padded per call (cheap, O(B * f_in)).
    x_pad = jnp.zeros((b_pad, d_pad[0]), jnp.float32).at[:B, :dims[0]].set(h)

    in_specs = [pl.BlockSpec((tile_b, d_pad[0]), lambda i: (i, 0))]
    operands = [x_pad]
    for li in range(num_layers):
        # Weights/biases: same block for every grid step -> stay resident.
        in_specs.append(
            pl.BlockSpec((d_pad[li], d_pad[li + 1]), lambda i: (0, 0)))
        in_specs.append(
            pl.BlockSpec((1, d_pad[li + 1]), lambda i: (0, 0)))
        operands.append(ws[li])
        operands.append(bs[li])
    out_spec = pl.BlockSpec((tile_b, d_pad[-1]), lambda i: (i, 0))

    # Advisory cost estimate (real, unpadded work).
    flops = 2 * B * sum(dims[i] * dims[i + 1] for i in range(num_layers))
    transcendentals = (B * sum(dims[1:])) if act == "tanh" else 0
    bytes_accessed = (
        x_pad.size * 4
        + sum(int(w.size) * w.dtype.itemsize for w in ws)
        + sum(int(b.size) * 4 for b in bs)
        + b_pad * d_pad[-1] * 4)
    cost = pl.CostEstimate(flops=int(flops),
                           transcendentals=int(transcendentals),
                           bytes_accessed=int(bytes_accessed))

    # Rough VMEM budget (double-buffered activation tiles + resident params +
    # in-flight intermediates).  Only raise the scoped limit when needed.
    param_bytes = (sum(int(w.size) * w.dtype.itemsize for w in ws)
                   + sum(int(b.size) * 4 for b in bs))
    act_bytes = tile_b * (d_pad[0] + d_pad[-1]) * 4 * 2
    inter_bytes = tile_b * max(d_pad) * 4 * 2
    vmem_est = 2 * param_bytes + act_bytes + inter_bytes
    cp_kwargs = dict(dimension_semantics=("parallel",))
    if vmem_est > (30 << 20):
        cp_kwargs["vmem_limit_bytes"] = int(min(vmem_est + (8 << 20), 64 << 20))

    kernel = functools.partial(_encoder_kernel, num_layers=num_layers, act=act)
    out_pad = pl.pallas_call(
        kernel,
        grid=grid,
        out_shape=jax.ShapeDtypeStruct((b_pad, d_pad[-1]), jnp.float32),
        in_specs=in_specs,
        out_specs=out_spec,
        compiler_params=pltpu.CompilerParams(**cp_kwargs),
        cost_estimate=cost,
    )(*operands)

    return out_pad[:B, :dims[-1]]


def make_encoder_forward(params, *, act, weight_dtype=jnp.float32,
                         batch_tile=256):
    """Returns a jitted forward fn.  Padding/packing happens once, here."""
    packed = pack_encoder_params(params, weight_dtype)
    dims = tuple([int(params[0][0].shape[0])]
                 + [int(w.shape[1]) for w, _ in params])
    fwd = jax.jit(functools.partial(
        _encoder_apply, dims=dims, act=act, batch_tile=batch_tile))
    return lambda x: fwd(x, packed)


# ----------------------------------------------------------------------------
# Parameter construction (mimics nn.Linear default init) + pure-JAX reference.
# ----------------------------------------------------------------------------
def make_encoder_params(key, input_size, encoder_num_layers, hidden_size):
    params = []
    fan_in = input_size
    for i in range(encoder_num_layers):
        fan_out = hidden_size if i == encoder_num_layers - 1 else fan_in // 2
        key, kw, kb = jax.random.split(key, 3)
        bound = 1.0 / jnp.sqrt(jnp.float32(fan_in))
        w = jax.random.uniform(kw, (fan_in, fan_out), jnp.float32, -bound, bound)
        b = jax.random.uniform(kb, (1, fan_out), jnp.float32, -bound, bound)
        params.append((w, b))
        fan_in = fan_out
    return params


def encoder_forward_ref(x, params, *, act, weight_dtype=jnp.float32):
    B = x.shape[0]
    h = x.astype(jnp.float32).reshape(B, -1)
    act_fn = jax.nn.relu if act == "relu" else jnp.tanh
    for w, b in params:
        if weight_dtype == jnp.float32:
            lhs, rhs = h, w
        else:
            lhs, rhs = h.astype(weight_dtype), w.astype(weight_dtype)
        h = act_fn(jnp.dot(lhs, rhs, preferred_element_type=jnp.float32) + b)
    return h


if __name__ == "__main__":
    # cfg: encoder_num_layers=3, hidden_size=32, act_fn='relu'
    encoder_num_layers = 3
    hidden_size = 32
    act = "relu"

    # Input: NCHW (batch=2, channels=4, spatial=16x16) -> flatten -> 1024 feats.
    key = jax.random.PRNGKey(0)
    kx, kp = jax.random.split(key)
    x = jax.random.normal(kx, (2, 4, 16, 16), dtype=jnp.float32)

    input_size = 4 * 16 * 16  # C*H*W after flatten
    params = make_encoder_params(kp, input_size, encoder_num_layers, hidden_size)

    # f32 weights: exact-match check against the pure-JAX reference.
    fwd_f32 = make_encoder_forward(params, act=act, weight_dtype=jnp.float32)
    out_f32 = jax.block_until_ready(fwd_f32(x))
    ref_f32 = encoder_forward_ref(x, params, act=act)
    assert out_f32.shape == (2, hidden_size), out_f32.shape
    assert jnp.allclose(out_f32, ref_f32, atol=1e-4, rtol=1e-4), "f32 mismatch"

    # bf16 weights (recommended on v6e/v7x): check against a bf16-weight ref.
    fwd_bf16 = make_encoder_forward(params, act=act, weight_dtype=jnp.bfloat16)
    out_bf16 = jax.block_until_ready(fwd_bf16(x))
    ref_bf16 = encoder_forward_ref(x, params, act=act, weight_dtype=jnp.bfloat16)
    assert out_bf16.shape == (2, hidden_size), out_bf16.shape
    assert jnp.allclose(out_bf16, ref_bf16, atol=2e-2, rtol=2e-2), "bf16 mismatch"

    print("KERNEL_OK")
</pallas_src>

<mosaic_0001>
module attributes {stable_mosaic.version = 11 : i64} {
  func.func @_encoder_kernel(%arg0: i32, %arg1: memref<8x1024xf32, #tpu.memory_space<vmem>>, %arg2: memref<1024x512xf32, #tpu.memory_space<vmem>>, %arg3: memref<1x512xf32, #tpu.memory_space<vmem>>, %arg4: memref<512x256xf32, #tpu.memory_space<vmem>>, %arg5: memref<1x256xf32, #tpu.memory_space<vmem>>, %arg6: memref<256x128xf32, #tpu.memory_space<vmem>>, %arg7: memref<1x128xf32, #tpu.memory_space<vmem>>, %arg8: memref<8x128xf32, #tpu.memory_space<vmem>>) attributes {dimension_semantics = [#tpu.dimension_semantics<parallel>], iteration_bounds = array<i64: 1>, scalar_prefetch = 0 : i64, scratch_operands = 0 : i64, tpu.core_type = #tpu.core_type<tc>, window_params = [{transform_indices = @transform_0, window_bounds = array<i64: 8, 1024>}, {pipeline_mode = #tpu.pipeline_mode<synchronous>, transform_indices = @transform_1, window_bounds = array<i64: 1024, 512>}, {pipeline_mode = #tpu.pipeline_mode<synchronous>, transform_indices = @transform_2, window_bounds = array<i64: 1, 512>}, {pipeline_mode = #tpu.pipeline_mode<synchronous>, transform_indices = @transform_3, window_bounds = array<i64: 512, 256>}, {pipeline_mode = #tpu.pipeline_mode<synchronous>, transform_indices = @transform_4, window_bounds = array<i64: 1, 256>}, {pipeline_mode = #tpu.pipeline_mode<synchronous>, transform_indices = @transform_5, window_bounds = array<i64: 256, 128>}, {pipeline_mode = #tpu.pipeline_mode<synchronous>, transform_indices = @transform_6, window_bounds = array<i64: 1, 128>}, {transform_indices = @transform_7, window_bounds = array<i64: 8, 128>}]} {
    %c0 = arith.constant 0 : index
    %c0_0 = arith.constant 0 : index
    %0 = vector.load %arg1[%c0, %c0_0] : memref<8x1024xf32, #tpu.memory_space<vmem>>, vector<8x1024xf32>
    %c0_1 = arith.constant 0 : index
    %c0_2 = arith.constant 0 : index
    %1 = vector.load %arg2[%c0_1, %c0_2] : memref<1024x512xf32, #tpu.memory_space<vmem>>, vector<1024x512xf32>
    %cst = arith.constant dense<0.000000e+00> : vector<8x512xf32>
    %2 = tpu.matmul %0, %1, %cst {dimension_numbers = #tpu.dot_dimension_numbers<[1], [0], [0], [1], [0, 0, 1, 1], [], []>} : vector<8x1024xf32>, vector<1024x512xf32>, vector<8x512xf32> -> vector<8x512xf32>
    %c0_3 = arith.constant 0 : index
    %c0_4 = arith.constant 0 : index
    %3 = vector.load %arg3[%c0_3, %c0_4] : memref<1x512xf32, #tpu.memory_space<vmem>>, vector<1x512xf32>
    %4 = vector.broadcast %3 : vector<1x512xf32> to vector<8x512xf32>
    %5 = arith.addf %2, %4 : vector<8x512xf32>
    %cst_5 = arith.constant 0.000000e+00 : f32
    %6 = vector.broadcast %cst_5 : f32 to vector<8x512xf32>
    %7 = arith.maximumf %5, %6 : vector<8x512xf32>
    %c0_6 = arith.constant 0 : index
    %c0_7 = arith.constant 0 : index
    %8 = vector.load %arg4[%c0_6, %c0_7] : memref<512x256xf32, #tpu.memory_space<vmem>>, vector<512x256xf32>
    %cst_8 = arith.constant dense<0.000000e+00> : vector<8x256xf32>
    %9 = tpu.matmul %7, %8, %cst_8 {dimension_numbers = #tpu.dot_dimension_numbers<[1], [0], [0], [1], [0, 0, 1, 1], [], []>} : vector<8x512xf32>, vector<512x256xf32>, vector<8x256xf32> -> vector<8x256xf32>
    %c0_9 = arith.constant 0 : index
    %c0_10 = arith.constant 0 : index
    %10 = vector.load %arg5[%c0_9, %c0_10] : memref<1x256xf32, #tpu.memory_space<vmem>>, vector<1x256xf32>
    %11 = vector.broadcast %10 : vector<1x256xf32> to vector<8x256xf32>
    %12 = arith.addf %9, %11 : vector<8x256xf32>
    %cst_11 = arith.constant 0.000000e+00 : f32
    %13 = vector.broadcast %cst_11 : f32 to vector<8x256xf32>
    %14 = arith.maximumf %12, %13 : vector<8x256xf32>
    %c0_12 = arith.constant 0 : index
    %c0_13 = arith.constant 0 : index
    %15 = vector.load %arg6[%c0_12, %c0_13] : memref<256x128xf32, #tpu.memory_space<vmem>>, vector<256x128xf32>
    %cst_14 = arith.constant dense<0.000000e+00> : vector<8x128xf32>
    %16 = tpu.matmul %14, %15, %cst_14 {dimension_numbers = #tpu.dot_dimension_numbers<[1], [0], [0], [1], [0, 0, 1, 1], [], []>} : vector<8x256xf32>, vector<256x128xf32>, vector<8x128xf32> -> vector<8x128xf32>
    %c0_15 = arith.constant 0 : index
    %c0_16 = arith.constant 0 : index
    %17 = vector.load %arg7[%c0_15, %c0_16] : memref<1x128xf32, #tpu.memory_space<vmem>>, vector<1x128xf32>
    %18 = vector.broadcast %17 : vector<1x128xf32> to vector<8x128xf32>
    %19 = arith.addf %16, %18 : vector<8x128xf32>
    %cst_17 = arith.constant 0.000000e+00 : f32
    %20 = vector.broadcast %cst_17 : f32 to vector<8x128xf32>
    %21 = arith.maximumf %19, %20 : vector<8x128xf32>
    %c0_18 = arith.constant 0 : index
    %c0_19 = arith.constant 0 : index
    %22 = vector.load %arg8[%c0_18, %c0_19] : memref<8x128xf32, #tpu.memory_space<vmem>>, vector<8x128xf32>
    tpu.vector_store %arg8[%c0_18, %c0_19], %21 {strides = array<i32>} : memref<8x128xf32, #tpu.memory_space<vmem>>, vector<8x128xf32>,
    return
  }
  func.func @transform_0(%arg0: i32) -> (i32, i32) {
    %c0_i32 = arith.constant 0 : i32
    %c0_i32_0 = arith.constant 0 : i32
    return %arg0, %c0_i32 : i32, i32
  }
  func.func @transform_1(%arg0: i32) -> (i32, i32) {
    %c0_i32 = arith.constant 0 : i32
    %c0_i32_0 = arith.constant 0 : i32
    %c0_i32_1 = arith.constant 0 : i32
    return %c0_i32, %c0_i32_0 : i32, i32
  }
  func.func @transform_2(%arg0: i32) -> (i32, i32) {
    %c0_i32 = arith.constant 0 : i32
    %c0_i32_0 = arith.constant 0 : i32
    %c0_i32_1 = arith.constant 0 : i32
    return %c0_i32, %c0_i32_0 : i32, i32
  }
  func.func @transform_3(%arg0: i32) -> (i32, i32) {
    %c0_i32 = arith.constant 0 : i32
    %c0_i32_0 = arith.constant 0 : i32
    %c0_i32_1 = arith.constant 0 : i32
    return %c0_i32, %c0_i32_0 : i32, i32
  }
  func.func @transform_4(%arg0: i32) -> (i32, i32) {
    %c0_i32 = arith.constant 0 : i32
    %c0_i32_0 = arith.constant 0 : i32
    %c0_i32_1 = arith.constant 0 : i32
    return %c0_i32, %c0_i32_0 : i32, i32
  }
  func.func @transform_5(%arg0: i32) -> (i32, i32) {
    %c0_i32 = arith.constant 0 : i32
    %c0_i32_0 = arith.constant 0 : i32
    %c0_i32_1 = arith.constant 0 : i32
    return %c0_i32, %c0_i32_0 : i32, i32
  }
  func.func @transform_6(%arg0: i32) -> (i32, i32) {
    %c0_i32 = arith.constant 0 : i32
    %c0_i32_0 = arith.constant 0 : i32
    %c0_i32_1 = arith.constant 0 : i32
    return %c0_i32, %c0_i32_0 : i32, i32
  }
  func.func @transform_7(%arg0: i32) -> (i32, i32) {
    %c0_i32 = arith.constant 0 : i32
    %c0_i32_0 = arith.constant 0 : i32
    return %arg0, %c0_i32 : i32, i32
  }
}

</mosaic_0001>

<llo_original>
// kernel: _encoder_apply.1
$region0: #{_encoder_apply.1}
  #allocation0 [shape = 'u32[]', space=smem, size = 0x4, offset = 0x4, fixed_abs, tag = 'smem constant byte address 0x4 - core index']
  #allocation1 [shape = 'u32[144,128]{1,0:T(1,128)}', space=vmem, size = 0x12000, scoped, tag = 'internal scratch']
  %s0 = inlined_call_operand.vmem [shape: f32[8,1024], index: 0, kind: input, shape index: {}]
  %s1 = inlined_call_operand.hbm [shape: f32[1024,512], index: 1, kind: input, shape index: {}]
  %s2 = inlined_call_operand.hbm [shape: f32[1,512], index: 2, kind: input, shape index: {}]
  %s3 = inlined_call_operand.hbm [shape: f32[512,256], index: 3, kind: input, shape index: {}]
  %s4 = inlined_call_operand.hbm [shape: f32[1,256], index: 4, kind: input, shape index: {}]
  %s5 = inlined_call_operand.hbm [shape: f32[256,128], index: 5, kind: input, shape index: {}]
  %s6 = inlined_call_operand.hbm [shape: f32[1,128], index: 6, kind: input, shape index: {}]
  %s7 = inlined_call_operand.vmem [shape: f32[8,128], index: 7, kind: output, shape index: {}]
  %s8 = sld [smem:[#allocation0]]
  $region62: #{_encoder_apply.1} parent=0
    _
  %s10 = ssub.s32 1, %s8
  %s11 = scalar_select 0, %s10, %s8
  $region1: #{_encoder_apply.1} parent=0
    #allocation2 [shape = 'u8[2097152]{0}', space=vmem, size = 0x200000, scoped, tag = 'input window, operand 1, single buffered']
    #allocation3 [shape = 's32[1]{0}', space=sflag, size = 0x4, scoped, tag = 'scoped memory for _encoder_apply.1']
    #allocation4 [shape = 'u8[2048]{0}', space=vmem, size = 0x800, scoped, tag = 'input window, operand 2, single buffered']
    #allocation5 [shape = 's32[1]{0}', space=sflag, size = 0x4, scoped, tag = 'scoped memory for _encoder_apply.1']
    #allocation6 [shape = 'u8[524288]{0}', space=vmem, size = 0x80000, scoped, tag = 'input window, operand 3, single buffered']
    #allocation7 [shape = 'u8[1024]{0}', space=vmem, size = 0x400, scoped, tag = 'input window, operand 4, single buffered']
    #allocation8 [shape = 's32[1]{0}', space=sflag, size = 0x4, scoped, tag = 'scoped memory for _encoder_apply.1']
    #allocation9 [shape = 'u8[131072]{0}', space=vmem, size = 0x20000, scoped, tag = 'input window, operand 5, single buffered']
    #allocation10 [shape = 'u8[512]{0}', space=vmem, size = 0x400, scoped, tag = 'input window, operand 6, single buffered']
    #allocation11 [shape = 's32[1]{0}', space=sflag, size = 0x4, scoped, tag = 'scoped memory for _encoder_apply.1']
    %12 = vsyncpa [#allocation3], 0
    %13 = vsyncpa [#allocation5], 0
    %14 = vsyncpa [#allocation8], 0
    %15 = vsyncpa [#allocation11], 0
    // Predicated region
    $region2: #{_encoder_apply.1} parent=1 // pred_check
      _
    $region3: #{_encoder_apply.1} parent=1 // pred_check_branch
      %17 = sbr.rel (0) target = $region5
    $region4: #{_encoder_apply.1} parent=1 // pred_region
      _
    $region5: #{_encoder_apply.1} parent=1 // pred_fallthru
      _
    // Predicated region
    $region6: #{_encoder_apply.1} parent=1 // pred_check
      _
    $region7: #{_encoder_apply.1} parent=1 // pred_check_branch
      %19 = sbr.rel (0) target = $region9
    $region8: #{_encoder_apply.1} parent=1 // pred_region
      %s21 = ssub.s32 65536, 65536
      %22 = vsyncadd [#allocation3], %s21
      %s23 = sshll.u32 [#allocation2], 4
      %s24 = int_to_ptr.vmem [resolvable:$true] %s23
      %29 = dma.hbm_to_vmem [thread:$0]  %s1, 65536, %s24, [#allocation3], 512, 512, 32
    $region9: #{_encoder_apply.1} parent=1 // pred_fallthru
      _
    // Predicated region
    $region10: #{_encoder_apply.1} parent=1 // pred_check
      _
    $region11: #{_encoder_apply.1} parent=1 // pred_check_branch
      %31 = sbr.rel (0) target = $region13
    $region12: #{_encoder_apply.1} parent=1 // pred_region
      %s33 = ssub.s32 64, 64
      %34 = vsyncadd [#allocation5], %s33
      %s36 = sshll.u32 [#allocation4], 4
      %s37 = int_to_ptr.vmem [resolvable:$true] %s36
      %39 = dma.hbm_to_vmem [thread:$0]  %s2, 64, %s37, [#allocation5]
    $region13: #{_encoder_apply.1} parent=1 // pred_fallthru
      _
    // Predicated region
    $region14: #{_encoder_apply.1} parent=1 // pred_check
      _
    $region15: #{_encoder_apply.1} parent=1 // pred_check_branch
      %41 = sbr.rel (0) target = $region17
    $region16: #{_encoder_apply.1} parent=1 // pred_region
      %s43 = ssub.s32 16384, 16384
      %44 = vsyncadd [#allocation5], %s43
      %s45 = sshll.u32 [#allocation6], 4
      %s46 = int_to_ptr.vmem [resolvable:$true] %s45
      %51 = dma.hbm_to_vmem [thread:$0]  %s3, 16384, %s46, [#allocation5], 256, 256, 16
    $region17: #{_encoder_apply.1} parent=1 // pred_fallthru
      _
    // Predicated region
    $region18: #{_encoder_apply.1} parent=1 // pred_check
      _
    $region19: #{_encoder_apply.1} parent=1 // pred_check_branch
      %53 = sbr.rel (0) target = $region21
    $region20: #{_encoder_apply.1} parent=1 // pred_region
      %s55 = ssub.s32 32, 32
      %56 = vsyncadd [#allocation8], %s55
      %s58 = sshll.u32 [#allocation7], 4
      %s59 = int_to_ptr.vmem [resolvable:$true] %s58
      %61 = dma.hbm_to_vmem [thread:$0]  %s4, 32, %s59, [#allocation8]
    $region21: #{_encoder_apply.1} parent=1 // pred_fallthru
      _
    // Predicated region
    $region22: #{_encoder_apply.1} parent=1 // pred_check
      _
    $region23: #{_encoder_apply.1} parent=1 // pred_check_branch
      %63 = sbr.rel (0) target = $region25
    $region24: #{_encoder_apply.1} parent=1 // pred_region
      %s65 = ssub.s32 4096, 4096
      %66 = vsyncadd [#allocation8], %s65
      %s67 = sshll.u32 [#allocation9], 4
      %s68 = int_to_ptr.vmem [resolvable:$true] %s67
      %73 = dma.hbm_to_vmem [thread:$0]  %s5, 4096, %s68, [#allocation8], 128, 128, 8
    $region25: #{_encoder_apply.1} parent=1 // pred_fallthru
      _
    // Predicated region
    $region26: #{_encoder_apply.1} parent=1 // pred_check
      _
    $region27: #{_encoder_apply.1} parent=1 // pred_check_branch
      %75 = sbr.rel (0) target = $region29
    $region28: #{_encoder_apply.1} parent=1 // pred_region
      %s77 = ssub.s32 16, 16
      %78 = vsyncadd [#allocation11], %s77
      %s80 = sshll.u32 [#allocation10], 4
      %s81 = int_to_ptr.vmem [resolvable:$true] %s80
      %83 = dma.hbm_to_vmem [thread:$0]  %s6, 16, %s81, [#allocation11]
    $region29: #{_encoder_apply.1} parent=1 // pred_fallthru
      _
    // Predicated region
    $region30: #{_encoder_apply.1} parent=1 // pred_check
      _
    $region31: #{_encoder_apply.1} parent=1 // pred_check_branch
      %85 = sbr.rel (0) target = $region33
    $region32: #{_encoder_apply.1} parent=1 // pred_region
      %86 = dma.done [#allocation3], 65536
    $region33: #{_encoder_apply.1} parent=1 // pred_fallthru
      _
    // Predicated region
    $region34: #{_encoder_apply.1} parent=1 // pred_check
      _
    $region35: #{_encoder_apply.1} parent=1 // pred_check_branch
      %88 = sbr.rel (0) target = $region37
    $region36: #{_encoder_apply.1} parent=1 // pred_region
      %89 = dma.done [#allocation5], 64
    $region37: #{_encoder_apply.1} parent=1 // pred_fallthru
      _
    // Predicated region
    $region38: #{_encoder_apply.1} parent=1 // pred_check
      _
    $region39: #{_encoder_apply.1} parent=1 // pred_check_branch
      %91 = sbr.rel (0) target = $region41
    $region40: #{_encoder_apply.1} parent=1 // pred_region
      %92 = dma.done [#allocation5], 16384
    $region41: #{_encoder_apply.1} parent=1 // pred_fallthru
      _
    // Predicated region
    $region42: #{_encoder_apply.1} parent=1 // pred_check
      _
    $region43: #{_encoder_apply.1} parent=1 // pred_check_branch
      %94 = sbr.rel (0) target = $region45
    $region44: #{_encoder_apply.1} parent=1 // pred_region
      %95 = dma.done [#allocation8], 32
    $region45: #{_encoder_apply.1} parent=1 // pred_fallthru
      _
    // Predicated region
    $region46: #{_encoder_apply.1} parent=1 // pred_check
      _
    $region47: #{_encoder_apply.1} parent=1 // pred_check_branch
      %97 = sbr.rel (0) target = $region49
    $region48: #{_encoder_apply.1} parent=1 // pred_region
      %98 = dma.done [#allocation8], 4096
    $region49: #{_encoder_apply.1} parent=1 // pred_fallthru
      _
    // Predicated region
    $region50: #{_encoder_apply.1} parent=1 // pred_check
      _
    $region51: #{_encoder_apply.1} parent=1 // pred_check_branch
      %100 = sbr.rel (0) target = $region53
    $region52: #{_encoder_apply.1} parent=1 // pred_region
      %101 = dma.done [#allocation11], 16
    $region53: #{_encoder_apply.1} parent=1 // pred_fallthru
      _
    %v102 = vld [vmem:[%s0] sm:$0xff]
    %v103 = vld [vmem:[%s0 + $0x8] sm:$0xff]
    %v104 = vld [vmem:[%s0 + $0x10] sm:$0xff]
    %v105 = vld [vmem:[%s0 + $0x18] sm:$0xff]
    %v106 = vld [vmem:[%s0 + $0x20] sm:$0xff]
    %v107 = vld [vmem:[%s0 + $0x28] sm:$0xff]
    %v108 = vld [vmem:[%s0 + $0x30] sm:$0xff]
    %v109 = vld [vmem:[%s0 + $0x38] sm:$0xff]
    %v110 = vld [vmem:[#allocation2] sm:$0xff]
    %v111 = vld [vmem:[#allocation2 + $0x8] sm:$0xff]
    %v112 = vld [vmem:[#allocation2 + $0x10] sm:$0xff]
    %v113 = vld [vmem:[#allocation2 + $0x18] sm:$0xff]
    %v114 = vld [vmem:[#allocation2 + $0x20] sm:$0xff]
    %v115 = vld [vmem:[#allocation2 + $0x28] sm:$0xff]
    %v116 = vld [vmem:[#allocation2 + $0x30] sm:$0xff]
    %v117 = vld [vmem:[#allocation2 + $0x38] sm:$0xff]
    %v118 = vld [vmem:[#allocation2 + $0x40] sm:$0xff]
    %v119 = vld [vmem:[#allocation2 + $0x48] sm:$0xff]
    %v120 = vld [vmem:[#allocation2 + $0x50] sm:$0xff]
    %v121 = vld [vmem:[#allocation2 + $0x58] sm:$0xff]
    %v122 = vld [vmem:[#allocation2 + $0x60] sm:$0xff]
    %v123 = vld [vmem:[#allocation2 + $0x68] sm:$0xff]
    %v124 = vld [vmem:[#allocation2 + $0x70] sm:$0xff]
    %v125 = vld [vmem:[#allocation2 + $0x78] sm:$0xff]
    %v126 = vld [vmem:[#allocation2 + $0x80] sm:$0xff]
    %v127 = vld [vmem:[#allocation2 + $0x88] sm:$0xff]
    %v128 = vld [vmem:[#allocation2 + $0x90] sm:$0xff]
    %v129 = vld [vmem:[#allocation2 + $0x98] sm:$0xff]
    %v130 = vld [vmem:[#allocation2 + $0xa0] sm:$0xff]
    %v131 = vld [vmem:[#allocation2 + $0xa8] sm:$0xff]
    %v132 = vld [vmem:[#allocation2 + $0xb0] sm:$0xff]
    %v133 = vld [vmem:[#allocation2 + $0xb8] sm:$0xff]
    %v134 = vld [vmem:[#allocation2 + $0xc0] sm:$0xff]
    %v135 = vld [vmem:[#allocation2 + $0xc8] sm:$0xff]
    %v136 = vld [vmem:[#allocation2 + $0xd0] sm:$0xff]
    %v137 = vld [vmem:[#allocation2 + $0xd8] sm:$0xff]
    %v138 = vld [vmem:[#allocation2 + $0xe0] sm:$0xff]
    %v139 = vld [vmem:[#allocation2 + $0xe8] sm:$0xff]
    %v140 = vld [vmem:[#allocation2 + $0xf0] sm:$0xff]
    %v141 = vld [vmem:[#allocation2 + $0xf8] sm:$0xff]
    %v142 = vld [vmem:[#allocation2 + $0x100] sm:$0xff]
    %v143 = vld [vmem:[#allocation2 + $0x108] sm:$0xff]
    %v144 = vld [vmem:[#allocation2 + $0x110] sm:$0xff]
    %v145 = vld [vmem:[#allocation2 + $0x118] sm:$0xff]
    %v146 = vld [vmem:[#allocation2 + $0x120] sm:$0xff]
    %v147 = vld [vmem:[#allocation2 + $0x128] sm:$0xff]
    %v148 = vld [vmem:[#allocation2 + $0x130] sm:$0xff]
    %v149 = vld [vmem:[#allocation2 + $0x138] sm:$0xff]
    %v150 = vld [vmem:[#allocation2 + $0x140] sm:$0xff]
    %v151 = vld [vmem:[#allocation2 + $0x148] sm:$0xff]
    %v152 = vld [vmem:[#allocation2 + $0x150] sm:$0xff]
    %v153 = vld [vmem:[#allocation2 + $0x158] sm:$0xff]
    %v154 = vld [vmem:[#allocation2 + $0x160] sm:$0xff]
    %v155 = vld [vmem:[#allocation2 + $0x168] sm:$0xff]
    %v156 = vld [vmem:[#allocation2 + $0x170] sm:$0xff]
    %v157 = vld [vmem:[#allocation2 + $0x178] sm:$0xff]
    %v158 = vld [vmem:[#allocation2 + $0x180] sm:$0xff]
    %v159 = vld [vmem:[#allocation2 + $0x188] sm:$0xff]
    %v160 = vld [vmem:[#allocation2 + $0x190] sm:$0xff]
    %v161 = vld [vmem:[#allocation2 + $0x198] sm:$0xff]
    %v162 = vld [vmem:[#allocation2 + $0x1a0] sm:$0xff]
    %v163 = vld [vmem:[#allocation2 + $0x1a8] sm:$0xff]
    %v164 = vld [vmem:[#allocation2 + $0x1b0] sm:$0xff]
    %v165 = vld [vmem:[#allocation2 + $0x1b8] sm:$0xff]
    %v166 = vld [vmem:[#allocation2 + $0x1c0] sm:$0xff]
    %v167 = vld [vmem:[#allocation2 + $0x1c8] sm:$0xff]
    %v168 = vld [vmem:[#allocation2 + $0x1d0] sm:$0xff]
    %v169 = vld [vmem:[#allocation2 + $0x1d8] sm:$0xff]
    %v170 = vld [vmem:[#allocation2 + $0x1e0] sm:$0xff]
    %v171 = vld [vmem:[#allocation2 + $0x1e8] sm:$0xff]
    %v172 = vld [vmem:[#allocation2 + $0x1f0] sm:$0xff]
    %v173 = vld [vmem:[#allocation2 + $0x1f8] sm:$0xff]
    %v174 = vld [vmem:[#allocation2 + $0x200] sm:$0xff]
    %v175 = vld [vmem:[#allocation2 + $0x208] sm:$0xff]
    %v176 = vld [vmem:[#allocation2 + $0x210] sm:$0xff]
    %v177 = vld [vmem:[#allocation2 + $0x218] sm:$0xff]
    %v178 = vld [vmem:[#allocation2 + $0x220] sm:$0xff]
    %v179 = vld [vmem:[#allocation2 + $0x228] sm:$0xff]
    %v180 = vld [vmem:[#allocation2 + $0x230] sm:$0xff]
    %v181 = vld [vmem:[#allocation2 + $0x238] sm:$0xff]
    %v182 = vld [vmem:[#allocation2 + $0x240] sm:$0xff]
    %v183 = vld [vmem:[#allocation2 + $0x248] sm:$0xff]
    %v184 = vld [vmem:[#allocation2 + $0x250] sm:$0xff]
    %v185 = vld [vmem:[#allocation2 + $0x258] sm:$0xff]
    %v186 = vld [vmem:[#allocation2 + $0x260] sm:$0xff]
    %v187 = vld [vmem:[#allocation2 + $0x268] sm:$0xff]
    %v188 = vld [vmem:[#allocation2 + $0x270] sm:$0xff]
    %v189 = vld [vmem:[#allocation2 + $0x278] sm:$0xff]
    %v190 = vld [vmem:[#allocation2 + $0x280] sm:$0xff]
    %v191 = vld [vmem:[#allocation2 + $0x288] sm:$0xff]
    %v192 = vld [vmem:[#allocation2 + $0x290] sm:$0xff]
    %v193 = vld [vmem:[#allocation2 + $0x298] sm:$0xff]
    %v194 = vld [vmem:[#allocation2 + $0x2a0] sm:$0xff]
    %v195 = vld [vmem:[#allocation2 + $0x2a8] sm:$0xff]
    %v196 = vld [vmem:[#allocation2 + $0x2b0] sm:$0xff]
    %v197 = vld [vmem:[#allocation2 + $0x2b8] sm:$0xff]
    %v198 = vld [vmem:[#allocation2 + $0x2c0] sm:$0xff]
    %v199 = vld [vmem:[#allocation2 + $0x2c8] sm:$0xff]
    %v200 = vld [vmem:[#allocation2 + $0x2d0] sm:$0xff]
    %v201 = vld [vmem:[#allocation2 + $0x2d8] sm:$0xff]
    %v202 = vld [vmem:[#allocation2 + $0x2e0] sm:$0xff]
    %v203 = vld [vmem:[#allocation2 + $0x2e8] sm:$0xff]
    %v204 = vld [vmem:[#allocation2 + $0x2f0] sm:$0xff]
    %v205 = vld [vmem:[#allocation2 + $0x2f8] sm:$0xff]
    %v206 = vld [vmem:[#allocation2 + $0x300] sm:$0xff]
    %v207 = vld [vmem:[#allocation2 + $0x308] sm:$0xff]
    %v208 = vld [vmem:[#allocation2 + $0x310] sm:$0xff]
    %v209 = vld [vmem:[#allocation2 + $0x318] sm:$0xff]
    %v210 = vld [vmem:[#allocation2 + $0x320] sm:$0xff]
    %v211 = vld [vmem:[#allocation2 + $0x328] sm:$0xff]
    %v212 = vld [vmem:[#allocation2 + $0x330] sm:$0xff]
    %v213 = vld [vmem:[#allocation2 + $0x338] sm:$0xff]
    %v214 = vld [vmem:[#allocation2 + $0x340] sm:$0xff]
    %v215 = vld [vmem:[#allocation2 + $0x348] sm:$0xff]
    %v216 = vld [vmem:[#allocation2 + $0x350] sm:$0xff]
    %v217 = vld [vmem:[#allocation2 + $0x358] sm:$0xff]
    %v218 = vld [vmem:[#allocation2 + $0x360] sm:$0xff]
    %v219 = vld [vmem:[#allocation2 + $0x368] sm:$0xff]
    %v220 = vld [vmem:[#allocation2 + $0x370] sm:$0xff]
    %v221 = vld [vmem:[#allocation2 + $0x378] sm:$0xff]
    %v222 = vld [vmem:[#allocation2 + $0x380] sm:$0xff]
    %v223 = vld [vmem:[#allocation2 + $0x388] sm:$0xff]
    %v224 = vld [vmem:[#allocation2 + $0x390] sm:$0xff]
    %v225 = vld [vmem:[#allocation2 + $0x398] sm:$0xff]
    %v226 = vld [vmem:[#allocation2 + $0x3a0] sm:$0xff]
    %v227 = vld [vmem:[#allocation2 + $0x3a8] sm:$0xff]
    %v228 = vld [vmem:[#allocation2 + $0x3b0] sm:$0xff]
    %v229 = vld [vmem:[#allocation2 + $0x3b8] sm:$0xff]
    %v230 = vld [vmem:[#allocation2 + $0x3c0] sm:$0xff]
    %v231 = vld [vmem:[#allocation2 + $0x3c8] sm:$0xff]
    %v232 = vld [vmem:[#allocation2 + $0x3d0] sm:$0xff]
    %v233 = vld [vmem:[#allocation2 + $0x3d8] sm:$0xff]
    %v234 = vld [vmem:[#allocation2 + $0x3e0] sm:$0xff]
    %v235 = vld [vmem:[#allocation2 + $0x3e8] sm:$0xff]
    %v236 = vld [vmem:[#allocation2 + $0x3f0] sm:$0xff]
    %v237 = vld [vmem:[#allocation2 + $0x3f8] sm:$0xff]
    %v238 = vld [vmem:[#allocation2 + $0x400] sm:$0xff]
    %v239 = vld [vmem:[#allocation2 + $0x408] sm:$0xff]
    %v240 = vld [vmem:[#allocation2 + $0x410] sm:$0xff]
    %v241 = vld [vmem:[#allocation2 + $0x418] sm:$0xff]
    %v242 = vld [vmem:[#allocation2 + $0x420] sm:$0xff]
    %v243 = vld [vmem:[#allocation2 + $0x428] sm:$0xff]
    %v244 = vld [vmem:[#allocation2 + $0x430] sm:$0xff]
    %v245 = vld [vmem:[#allocation2 + $0x438] sm:$0xff]
    %v246 = vld [vmem:[#allocation2 + $0x440] sm:$0xff]
    %v247 = vld [vmem:[#allocation2 + $0x448] sm:$0xff]
    %v248 = vld [vmem:[#allocation2 + $0x450] sm:$0xff]
    %v249 = vld [vmem:[#allocation2 + $0x458] sm:$0xff]
    %v250 = vld [vmem:[#allocation2 + $0x460] sm:$0xff]
    %v251 = vld [vmem:[#allocation2 + $0x468] sm:$0xff]
    %v252 = vld [vmem:[#allocation2 + $0x470] sm:$0xff]
    %v253 = vld [vmem:[#allocation2 + $0x478] sm:$0xff]
    %v254 = vld [vmem:[#allocation2 + $0x480] sm:$0xff]
    %v255 = vld [vmem:[#allocation2 + $0x488] sm:$0xff]
    %v256 = vld [vmem:[#allocation2 + $0x490] sm:$0xff]
    %v257 = vld [vmem:[#allocation2 + $0x498] sm:$0xff]
    %v258 = vld [vmem:[#allocation2 + $0x4a0] sm:$0xff]
    %v259 = vld [vmem:[#allocation2 + $0x4a8] sm:$0xff]
    %v260 = vld [vmem:[#allocation2 + $0x4b0] sm:$0xff]
    %v261 = vld [vmem:[#allocation2 + $0x4b8] sm:$0xff]
    %v262 = vld [vmem:[#allocation2 + $0x4c0] sm:$0xff]
    %v263 = vld [vmem:[#allocation2 + $0x4c8] sm:$0xff]
    %v264 = vld [vmem:[#allocation2 + $0x4d0] sm:$0xff]
    %v265 = vld [vmem:[#allocation2 + $0x4d8] sm:$0xff]
    %v266 = vld [vmem:[#allocation2 + $0x4e0] sm:$0xff]
    %v267 = vld [vmem:[#allocation2 + $0x4e8] sm:$0xff]
    %v268 = vld [vmem:[#allocation2 + $0x4f0] sm:$0xff]
    %v269 = vld [vmem:[#allocation2 + $0x4f8] sm:$0xff]
    %v270 = vld [vmem:[#allocation2 + $0x500] sm:$0xff]
    %v271 = vld [vmem:[#allocation2 + $0x508] sm:$0xff]
    %v272 = vld [vmem:[#allocation2 + $0x510] sm:$0xff]
    %v273 = vld [vmem:[#allocation2 + $0x518] sm:$0xff]
    %v274 = vld [vmem:[#allocation2 + $0x520] sm:$0xff]
    %v275 = vld [vmem:[#allocation2 + $0x528] sm:$0xff]
    %v276 = vld [vmem:[#allocation2 + $0x530] sm:$0xff]
    %v277 = vld [vmem:[#allocation2 + $0x538] sm:$0xff]
    %v278 = vld [vmem:[#allocation2 + $0x540] sm:$0xff]
    %v279 = vld [vmem:[#allocation2 + $0x548] sm:$0xff]
    %v280 = vld [vmem:[#allocation2 + $0x550] sm:$0xff]
    %v281 = vld [vmem:[#allocation2 + $0x558] sm:$0xff]
    %v282 = vld [vmem:[#allocation2 + $0x560] sm:$0xff]
    %v283 = vld [vmem:[#allocation2 + $0x568] sm:$0xff]
    %v284 = vld [vmem:[#allocation2 + $0x570] sm:$0xff]
    %v285 = vld [vmem:[#allocation2 + $0x578] sm:$0xff]
    %v286 = vld [vmem:[#allocation2 + $0x580] sm:$0xff]
    %v287 = vld [vmem:[#allocation2 + $0x588] sm:$0xff]
    %v288 = vld [vmem:[#allocation2 + $0x590] sm:$0xff]
    %v289 = vld [vmem:[#allocation2 + $0x598] sm:$0xff]
    %v290 = vld [vmem:[#allocation2 + $0x5a0] sm:$0xff]
    %v291 = vld [vmem:[#allocation2 + $0x5a8] sm:$0xff]
    %v292 = vld [vmem:[#allocation2 + $0x5b0] sm:$0xff]
    %v293 = vld [vmem:[#allocation2 + $0x5b8] sm:$0xff]
    %v294 = vld [vmem:[#allocation2 + $0x5c0] sm:$0xff]
    %v295 = vld [vmem:[#allocation2 + $0x5c8] sm:$0xff]
    %v296 = vld [vmem:[#allocation2 + $0x5d0] sm:$0xff]
    %v297 = vld [vmem:[#allocation2 + $0x5d8] sm:$0xff]
    %v298 = vld [vmem:[#allocation2 + $0x5e0] sm:$0xff]
    %v299 = vld [vmem:[#allocation2 + $0x5e8] sm:$0xff]
    %v300 = vld [vmem:[#allocation2 + $0x5f0] sm:$0xff]
    %v301 = vld [vmem:[#allocation2 + $0x5f8] sm:$0xff]
    %v302 = vld [vmem:[#allocation2 + $0x600] sm:$0xff]
    %v303 = vld [vmem:[#allocation2 + $0x608] sm:$0xff]
    %v304 = vld [vmem:[#allocation2 + $0x610] sm:$0xff]
    %v305 = vld [vmem:[#allocation2 + $0x618] sm:$0xff]
    %v306 = vld [vmem:[#allocation2 + $0x620] sm:$0xff]
    %v307 = vld [vmem:[#allocation2 + $0x628] sm:$0xff]
    %v308 = vld [vmem:[#allocation2 + $0x630] sm:$0xff]
    %v309 = vld [vmem:[#allocation2 + $0x638] sm:$0xff]
    %v310 = vld [vmem:[#allocation2 + $0x640] sm:$0xff]
    %v311 = vld [vmem:[#allocation2 + $0x648] sm:$0xff]
    %v312 = vld [vmem:[#allocation2 + $0x650] sm:$0xff]
    %v313 = vld [vmem:[#allocation2 + $0x658] sm:$0xff]
    %v314 = vld [vmem:[#allocation2 + $0x660] sm:$0xff]
    %v315 = vld [vmem:[#allocation2 + $0x668] sm:$0xff]
    %v316 = vld [vmem:[#allocation2 + $0x670] sm:$0xff]
    %v317 = vld [vmem:[#allocation2 + $0x678] sm:$0xff]
    %v318 = vld [vmem:[#allocation2 + $0x680] sm:$0xff]
    %v319 = vld [vmem:[#allocation2 + $0x688] sm:$0xff]
    %v320 = vld [vmem:[#allocation2 + $0x690] sm:$0xff]
    %v321 = vld [vmem:[#allocation2 + $0x698] sm:$0xff]
    %v322 = vld [vmem:[#allocation2 + $0x6a0] sm:$0xff]
    %v323 = vld [vmem:[#allocation2 + $0x6a8] sm:$0xff]
    %v324 = vld [vmem:[#allocation2 + $0x6b0] sm:$0xff]
    %v325 = vld [vmem:[#allocation2 + $0x6b8] sm:$0xff]
    %v326 = vld [vmem:[#allocation2 + $0x6c0] sm:$0xff]
    %v327 = vld [vmem:[#allocation2 + $0x6c8] sm:$0xff]
    %v328 = vld [vmem:[#allocation2 + $0x6d0] sm:$0xff]
    %v329 = vld [vmem:[#allocation2 + $0x6d8] sm:$0xff]
    %v330 = vld [vmem:[#allocation2 + $0x6e0] sm:$0xff]
    %v331 = vld [vmem:[#allocation2 + $0x6e8] sm:$0xff]
    %v332 = vld [vmem:[#allocation2 + $0x6f0] sm:$0xff]
    %v333 = vld [vmem:[#allocation2 + $0x6f8] sm:$0xff]
    %v334 = vld [vmem:[#allocation2 + $0x700] sm:$0xff]
    %v335 = vld [vmem:[#allocation2 + $0x708] sm:$0xff]
    %v336 = vld [vmem:[#allocation2 + $0x710] sm:$0xff]
    %v337 = vld [vmem:[#allocation2 + $0x718] sm:$0xff]
    %v338 = vld [vmem:[#allocation2 + $0x720] sm:$0xff]
    %v339 = vld [vmem:[#allocation2 + $0x728] sm:$0xff]
    %v340 = vld [vmem:[#allocation2 + $0x730] sm:$0xff]
    %v341 = vld [vmem:[#allocation2 + $0x738] sm:$0xff]
    %v342 = vld [vmem:[#allocation2 + $0x740] sm:$0xff]
    %v343 = vld [vmem:[#allocation2 + $0x748] sm:$0xff]
    %v344 = vld [vmem:[#allocation2 + $0x750] sm:$0xff]
    %v345 = vld [vmem:[#allocation2 + $0x758] sm:$0xff]
    %v346 = vld [vmem:[#allocation2 + $0x760] sm:$0xff]
    %v347 = vld [vmem:[#allocation2 + $0x768] sm:$0xff]
    %v348 = vld [vmem:[#allocation2 + $0x770] sm:$0xff]
    %v349 = vld [vmem:[#allocation2 + $0x778] sm:$0xff]
    %v350 = vld [vmem:[#allocation2 + $0x780] sm:$0xff]
    %v351 = vld [vmem:[#allocation2 + $0x788] sm:$0xff]
    %v352 = vld [vmem:[#allocation2 + $0x790] sm:$0xff]
    %v353 = vld [vmem:[#allocation2 + $0x798] sm:$0xff]
    %v354 = vld [vmem:[#allocation2 + $0x7a0] sm:$0xff]
    %v355 = vld [vmem:[#allocation2 + $0x7a8] sm:$0xff]
    %v356 = vld [vmem:[#allocation2 + $0x7b0] sm:$0xff]
    %v357 = vld [vmem:[#allocation2 + $0x7b8] sm:$0xff]
    %v358 = vld [vmem:[#allocation2 + $0x7c0] sm:$0xff]
    %v359 = vld [vmem:[#allocation2 + $0x7c8] sm:$0xff]
    %v360 = vld [vmem:[#allocation2 + $0x7d0] sm:$0xff]
    %v361 = vld [vmem:[#allocation2 + $0x7d8] sm:$0xff]
    %v362 = vld [vmem:[#allocation2 + $0x7e0] sm:$0xff]
    %v363 = vld [vmem:[#allocation2 + $0x7e8] sm:$0xff]
    %v364 = vld [vmem:[#allocation2 + $0x7f0] sm:$0xff]
    %v365 = vld [vmem:[#allocation2 + $0x7f8] sm:$0xff]
    %v366 = vld [vmem:[#allocation2 + $0x800] sm:$0xff]
    %v367 = vld [vmem:[#allocation2 + $0x808] sm:$0xff]
    %v368 = vld [vmem:[#allocation2 + $0x810] sm:$0xff]
    %v369 = vld [vmem:[#allocation2 + $0x818] sm:$0xff]
    %v370 = vld [vmem:[#allocation2 + $0x820] sm:$0xff]
    %v371 = vld [vmem:[#allocation2 + $0x828] sm:$0xff]
    %v372 = vld [vmem:[#allocation2 + $0x830] sm:$0xff]
    %v373 = vld [vmem:[#allocation2 + $0x838] sm:$0xff]
    %v374 = vld [vmem:[#allocation2 + $0x840] sm:$0xff]
    %v375 = vld [vmem:[#allocation2 + $0x848] sm:$0xff]
    %v376 = vld [vmem:[#allocation2 + $0x850] sm:$0xff]
    %v377 = vld [vmem:[#allocation2 + $0x858] sm:$0xff]
    %v378 = vld [vmem:[#allocation2 + $0x860] sm:$0xff]
    %v379 = vld [vmem:[#allocation2 + $0x868] sm:$0xff]
    %v380 = vld [vmem:[#allocation2 + $0x870] sm:$0xff]
    %v381 = vld [vmem:[#allocation2 + $0x878] sm:$0xff]
    %v382 = vld [vmem:[#allocation2 + $0x880] sm:$0xff]
    %v383 = vld [vmem:[#allocation2 + $0x888] sm:$0xff]
    %v384 = vld [vmem:[#allocation2 + $0x890] sm:$0xff]
    %v385 = vld [vmem:[#allocation2 + $0x898] sm:$0xff]
    %v386 = vld [vmem:[#allocation2 + $0x8a0] sm:$0xff]
    %v387 = vld [vmem:[#allocation2 + $0x8a8] sm:$0xff]
    %v388 = vld [vmem:[#allocation2 + $0x8b0] sm:$0xff]
    %v389 = vld [vmem:[#allocation2 + $0x8b8] sm:$0xff]
    %v390 = vld [vmem:[#allocation2 + $0x8c0] sm:$0xff]
    %v391 = vld [vmem:[#allocation2 + $0x8c8] sm:$0xff]
    %v392 = vld [vmem:[#allocation2 + $0x8d0] sm:$0xff]
    %v393 = vld [vmem:[#allocation2 + $0x8d8] sm:$0xff]
    %v394 = vld [vmem:[#allocation2 + $0x8e0] sm:$0xff]
    %v395 = vld [vmem:[#allocation2 + $0x8e8] sm:$0xff]
    %v396 = vld [vmem:[#allocation2 + $0x8f0] sm:$0xff]
    %v397 = vld [vmem:[#allocation2 + $0x8f8] sm:$0xff]
    %v398 = vld [vmem:[#allocation2 + $0x900] sm:$0xff]
    %v399 = vld [vmem:[#allocation2 + $0x908] sm:$0xff]
    %v400 = vld [vmem:[#allocation2 + $0x910] sm:$0xff]
    %v401 = vld [vmem:[#allocation2 + $0x918] sm:$0xff]
    %v402 = vld [vmem:[#allocation2 + $0x920] sm:$0xff]
    %v403 = vld [vmem:[#allocation2 + $0x928] sm:$0xff]
    %v404 = vld [vmem:[#allocation2 + $0x930] sm:$0xff]
    %v405 = vld [vmem:[#allocation2 + $0x938] sm:$0xff]
    %v406 = vld [vmem:[#allocation2 + $0x940] sm:$0xff]
    %v407 = vld [vmem:[#allocation2 + $0x948] sm:$0xff]
    %v408 = vld [vmem:[#allocation2 + $0x950] sm:$0xff]
    %v409 = vld [vmem:[#allocation2 + $0x958] sm:$0xff]
    %v410 = vld [vmem:[#allocation2 + $0x960] sm:$0xff]
    %v411 = vld [vmem:[#allocation2 + $0x968] sm:$0xff]
    %v412 = vld [vmem:[#allocation2 + $0x970] sm:$0xff]
    %v413 = vld [vmem:[#allocation2 + $0x978] sm:$0xff]
    %v414 = vld [vmem:[#allocation2 + $0x980] sm:$0xff]
    %v415 = vld [vmem:[#allocation2 + $0x988] sm:$0xff]
    %v416 = vld [vmem:[#allocation2 + $0x990] sm:$0xff]
    %v417 = vld [vmem:[#allocation2 + $0x998] sm:$0xff]
    %v418 = vld [vmem:[#allocation2 + $0x9a0] sm:$0xff]
    %v419 = vld [vmem:[#allocation2 + $0x9a8] sm:$0xff]
    %v420 = vld [vmem:[#allocation2 + $0x9b0] sm:$0xff]
    %v421 = vld [vmem:[#allocation2 + $0x9b8] sm:$0xff]
    %v422 = vld [vmem:[#allocation2 + $0x9c0] sm:$0xff]
    %v423 = vld [vmem:[#allocation2 + $0x9c8] sm:$0xff]
    %v424 = vld [vmem:[#allocation2 + $0x9d0] sm:$0xff]
    %v425 = vld [vmem:[#allocation2 + $0x9d8] sm:$0xff]
    %v426 = vld [vmem:[#allocation2 + $0x9e0] sm:$0xff]
    %v427 = vld [vmem:[#allocation2 + $0x9e8] sm:$0xff]
    %v428 = vld [vmem:[#allocation2 + $0x9f0] sm:$0xff]
    %v429 = vld [vmem:[#allocation2 + $0x9f8] sm:$0xff]
    %v430 = vld [vmem:[#allocation2 + $0xa00] sm:$0xff]
    %v431 = vld [vmem:[#allocation2 + $0xa08] sm:$0xff]
    %v432 = vld [vmem:[#allocation2 + $0xa10] sm:$0xff]
    %v433 = vld [vmem:[#allocation2 + $0xa18] sm:$0xff]
    %v434 = vld [vmem:[#allocation2 + $0xa20] sm:$0xff]
    %v435 = vld [vmem:[#allocation2 + $0xa28] sm:$0xff]
    %v436 = vld [vmem:[#allocation2 + $0xa30] sm:$0xff]
    %v437 = vld [vmem:[#allocation2 + $0xa38] sm:$0xff]
    %v438 = vld [vmem:[#allocation2 + $0xa40] sm:$0xff]
    %v439 = vld [vmem:[#allocation2 + $0xa48] sm:$0xff]
    %v440 = vld [vmem:[#allocation2 + $0xa50] sm:$0xff]
    %v441 = vld [vmem:[#allocation2 + $0xa58] sm:$0xff]
    %v442 = vld [vmem:[#allocation2 + $0xa60] sm:$0xff]
    %v443 = vld [vmem:[#allocation2 + $0xa68] sm:$0xff]
    %v444 = vld [vmem:[#allocation2 + $0xa70] sm:$0xff]
    %v445 = vld [vmem:[#allocation2 + $0xa78] sm:$0xff]
    %v446 = vld [vmem:[#allocation2 + $0xa80] sm:$0xff]
    %v447 = vld [vmem:[#allocation2 + $0xa88] sm:$0xff]
    %v448 = vld [vmem:[#allocation2 + $0xa90] sm:$0xff]
    %v449 = vld [vmem:[#allocation2 + $0xa98] sm:$0xff]
    %v450 = vld [vmem:[#allocation2 + $0xaa0] sm:$0xff]
    %v451 = vld [vmem:[#allocation2 + $0xaa8] sm:$0xff]
    %v452 = vld [vmem:[#allocation2 + $0xab0] sm:$0xff]
    %v453 = vld [vmem:[#allocation2 + $0xab8] sm:$0xff]
    %v454 = vld [vmem:[#allocation2 + $0xac0] sm:$0xff]
    %v455 = vld [vmem:[#allocation2 + $0xac8] sm:$0xff]
    %v456 = vld [vmem:[#allocation2 + $0xad0] sm:$0xff]
    %v457 = vld [vmem:[#allocation2 + $0xad8] sm:$0xff]
    %v458 = vld [vmem:[#allocation2 + $0xae0] sm:$0xff]
    %v459 = vld [vmem:[#allocation2 + $0xae8] sm:$0xff]
    %v460 = vld [vmem:[#allocation2 + $0xaf0] sm:$0xff]
    %v461 = vld [vmem:[#allocation2 + $0xaf8] sm:$0xff]
    %v462 = vld [vmem:[#allocation2 + $0xb00] sm:$0xff]
    %v463 = vld [vmem:[#allocation2 + $0xb08] sm:$0xff]
    %v464 = vld [vmem:[#allocation2 + $0xb10] sm:$0xff]
    %v465 = vld [vmem:[#allocation2 + $0xb18] sm:$0xff]
    %v466 = vld [vmem:[#allocation2 + $0xb20] sm:$0xff]
    %v467 = vld [vmem:[#allocation2 + $0xb28] sm:$0xff]
    %v468 = vld [vmem:[#allocation2 + $0xb30] sm:$0xff]
    %v469 = vld [vmem:[#allocation2 + $0xb38] sm:$0xff]
    %v470 = vld [vmem:[#allocation2 + $0xb40] sm:$0xff]
    %v471 = vld [vmem:[#allocation2 + $0xb48] sm:$0xff]
    %v472 = vld [vmem:[#allocation2 + $0xb50] sm:$0xff]
    %v473 = vld [vmem:[#allocation2 + $0xb58] sm:$0xff]
    %v474 = vld [vmem:[#allocation2 + $0xb60] sm:$0xff]
    %v475 = vld [vmem:[#allocation2 + $0xb68] sm:$0xff]
    %v476 = vld [vmem:[#allocation2 + $0xb70] sm:$0xff]
    %v477 = vld [vmem:[#allocation2 + $0xb78] sm:$0xff]
    %v478 = vld [vmem:[#allocation2 + $0xb80] sm:$0xff]
    %v479 = vld [vmem:[#allocation2 + $0xb88] sm:$0xff]
    %v480 = vld [vmem:[#allocation2 + $0xb90] sm:$0xff]
    %v481 = vld [vmem:[#allocation2 + $0xb98] sm:$0xff]
    %v482 = vld [vmem:[#allocation2 + $0xba0] sm:$0xff]
    %v483 = vld [vmem:[#allocation2 + $0xba8] sm:$0xff]
    %v484 = vld [vmem:[#allocation2 + $0xbb0] sm:$0xff]
    %v485 = vld [vmem:[#allocation2 + $0xbb8] sm:$0xff]
    %v486 = vld [vmem:[#allocation2 + $0xbc0] sm:$0xff]
    %v487 = vld [vmem:[#allocation2 + $0xbc8] sm:$0xff]
    %v488 = vld [vmem:[#allocation2 + $0xbd0] sm:$0xff]
    %v489 = vld [vmem:[#allocation2 + $0xbd8] sm:$0xff]
    %v490 = vld [vmem:[#allocation2 + $0xbe0] sm:$0xff]
    %v491 = vld [vmem:[#allocation2 + $0xbe8] sm:$0xff]
    %v492 = vld [vmem:[#allocation2 + $0xbf0] sm:$0xff]
    %v493 = vld [vmem:[#allocation2 + $0xbf8] sm:$0xff]
    %v494 = vld [vmem:[#allocation2 + $0xc00] sm:$0xff]
    %v495 = vld [vmem:[#allocation2 + $0xc08] sm:$0xff]
    %v496 = vld [vmem:[#allocation2 + $0xc10] sm:$0xff]
    %v497 = vld [vmem:[#allocation2 + $0xc18] sm:$0xff]
    %v498 = vld [vmem:[#allocation2 + $0xc20] sm:$0xff]
    %v499 = vld [vmem:[#allocation2 + $0xc28] sm:$0xff]
    %v500 = vld [vmem:[#allocation2 + $0xc30] sm:$0xff]
    %v501 = vld [vmem:[#allocation2 + $0xc38] sm:$0xff]
    %v502 = vld [vmem:[#allocation2 + $0xc40] sm:$0xff]
    %v503 = vld [vmem:[#allocation2 + $0xc48] sm:$0xff]
    %v504 = vld [vmem:[#allocation2 + $0xc50] sm:$0xff]
    %v505 = vld [vmem:[#allocation2 + $0xc58] sm:$0xff]
    %v506 = vld [vmem:[#allocation2 + $0xc60] sm:$0xff]
    %v507 = vld [vmem:[#allocation2 + $0xc68] sm:$0xff]
    %v508 = vld [vmem:[#allocation2 + $0xc70] sm:$0xff]
    %v509 = vld [vmem:[#allocation2 + $0xc78] sm:$0xff]
    %v510 = vld [vmem:[#allocation2 + $0xc80] sm:$0xff]
    %v511 = vld [vmem:[#allocation2 + $0xc88] sm:$0xff]
    %v512 = vld [vmem:[#allocation2 + $0xc90] sm:$0xff]
    %v513 = vld [vmem:[#allocation2 + $0xc98] sm:$0xff]
    %v514 = vld [vmem:[#allocation2 + $0xca0] sm:$0xff]
    %v515 = vld [vmem:[#allocation2 + $0xca8] sm:$0xff]
    %v516 = vld [vmem:[#allocation2 + $0xcb0] sm:$0xff]
    %v517 = vld [vmem:[#allocation2 + $0xcb8] sm:$0xff]
    %v518 = vld [vmem:[#allocation2 + $0xcc0] sm:$0xff]
    %v519 = vld [vmem:[#allocation2 + $0xcc8] sm:$0xff]
    %v520 = vld [vmem:[#allocation2 + $0xcd0] sm:$0xff]
    %v521 = vld [vmem:[#allocation2 + $0xcd8] sm:$0xff]
    %v522 = vld [vmem:[#allocation2 + $0xce0] sm:$0xff]
    %v523 = vld [vmem:[#allocation2 + $0xce8] sm:$0xff]
    %v524 = vld [vmem:[#allocation2 + $0xcf0] sm:$0xff]
    %v525 = vld [vmem:[#allocation2 + $0xcf8] sm:$0xff]
    %v526 = vld [vmem:[#allocation2 + $0xd00] sm:$0xff]
    %v527 = vld [vmem:[#allocation2 + $0xd08] sm:$0xff]
    %v528 = vld [vmem:[#allocation2 + $0xd10] sm:$0xff]
    %v529 = vld [vmem:[#allocation2 + $0xd18] sm:$0xff]
    %v530 = vld [vmem:[#allocation2 + $0xd20] sm:$0xff]
    %v531 = vld [vmem:[#allocation2 + $0xd28] sm:$0xff]
    %v532 = vld [vmem:[#allocation2 + $0xd30] sm:$0xff]
    %v533 = vld [vmem:[#allocation2 + $0xd38] sm:$0xff]
    %v534 = vld [vmem:[#allocation2 + $0xd40] sm:$0xff]
    %v535 = vld [vmem:[#allocation2 + $0xd48] sm:$0xff]
    %v536 = vld [vmem:[#allocation2 + $0xd50] sm:$0xff]
    %v537 = vld [vmem:[#allocation2 + $0xd58] sm:$0xff]
    %v538 = vld [vmem:[#allocation2 + $0xd60] sm:$0xff]
    %v539 = vld [vmem:[#allocation2 + $0xd68] sm:$0xff]
    %v540 = vld [vmem:[#allocation2 + $0xd70] sm:$0xff]
    %v541 = vld [vmem:[#allocation2 + $0xd78] sm:$0xff]
    %v542 = vld [vmem:[#allocation2 + $0xd80] sm:$0xff]
    %v543 = vld [vmem:[#allocation2 + $0xd88] sm:$0xff]
    %v544 = vld [vmem:[#allocation2 + $0xd90] sm:$0xff]
    %v545 = vld [vmem:[#allocation2 + $0xd98] sm:$0xff]
    %v546 = vld [vmem:[#allocation2 + $0xda0] sm:$0xff]
    %v547 = vld [vmem:[#allocation2 + $0xda8] sm:$0xff]
    %v548 = vld [vmem:[#allocation2 + $0xdb0] sm:$0xff]
    %v549 = vld [vmem:[#allocation2 + $0xdb8] sm:$0xff]
    %v550 = vld [vmem:[#allocation2 + $0xdc0] sm:$0xff]
    %v551 = vld [vmem:[#allocation2 + $0xdc8] sm:$0xff]
    %v552 = vld [vmem:[#allocation2 + $0xdd0] sm:$0xff]
    %v553 = vld [vmem:[#allocation2 + $0xdd8] sm:$0xff]
    %v554 = vld [vmem:[#allocation2 + $0xde0] sm:$0xff]
    %v555 = vld [vmem:[#allocation2 + $0xde8] sm:$0xff]
    %v556 = vld [vmem:[#allocation2 + $0xdf0] sm:$0xff]
    %v557 = vld [vmem:[#allocation2 + $0xdf8] sm:$0xff]
    %v558 = vld [vmem:[#allocation2 + $0xe00] sm:$0xff]
    %v559 = vld [vmem:[#allocation2 + $0xe08] sm:$0xff]
    %v560 = vld [vmem:[#allocation2 + $0xe10] sm:$0xff]
    %v561 = vld [vmem:[#allocation2 + $0xe18] sm:$0xff]
    %v562 = vld [vmem:[#allocation2 + $0xe20] sm:$0xff]
    %v563 = vld [vmem:[#allocation2 + $0xe28] sm:$0xff]
    %v564 = vld [vmem:[#allocation2 + $0xe30] sm:$0xff]
    %v565 = vld [vmem:[#allocation2 + $0xe38] sm:$0xff]
    %v566 = vld [vmem:[#allocation2 + $0xe40] sm:$0xff]
    %v567 = vld [vmem:[#allocation2 + $0xe48] sm:$0xff]
    %v568 = vld [vmem:[#allocation2 + $0xe50] sm:$0xff]
    %v569 = vld [vmem:[#allocation2 + $0xe58] sm:$0xff]
    %v570 = vld [vmem:[#allocation2 + $0xe60] sm:$0xff]
    %v571 = vld [vmem:[#allocation2 + $0xe68] sm:$0xff]
    %v572 = vld [vmem:[#allocation2 + $0xe70] sm:$0xff]
    %v573 = vld [vmem:[#allocation2 + $0xe78] sm:$0xff]
    %v574 = vld [vmem:[#allocation2 + $0xe80] sm:$0xff]
    %v575 = vld [vmem:[#allocation2 + $0xe88] sm:$0xff]
    %v576 = vld [vmem:[#allocation2 + $0xe90] sm:$0xff]
    %v577 = vld [vmem:[#allocation2 + $0xe98] sm:$0xff]
    %v578 = vld [vmem:[#allocation2 + $0xea0] sm:$0xff]
    %v579 = vld [vmem:[#allocation2 + $0xea8] sm:$0xff]
    %v580 = vld [vmem:[#allocation2 + $0xeb0] sm:$0xff]
    %v581 = vld [vmem:[#allocation2 + $0xeb8] sm:$0xff]
    %v582 = vld [vmem:[#allocation2 + $0xec0] sm:$0xff]
    %v583 = vld [vmem:[#allocation2 + $0xec8] sm:$0xff]
    %v584 = vld [vmem:[#allocation2 + $0xed0] sm:$0xff]
    %v585 = vld [vmem:[#allocation2 + $0xed8] sm:$0xff]
    %v586 = vld [vmem:[#allocation2 + $0xee0] sm:$0xff]
    %v587 = vld [vmem:[#allocation2 + $0xee8] sm:$0xff]
    %v588 = vld [vmem:[#allocation2 + $0xef0] sm:$0xff]
    %v589 = vld [vmem:[#allocation2 + $0xef8] sm:$0xff]
    %v590 = vld [vmem:[#allocation2 + $0xf00] sm:$0xff]
    %v591 = vld [vmem:[#allocation2 + $0xf08] sm:$0xff]
    %v592 = vld [vmem:[#allocation2 + $0xf10] sm:$0xff]
    %v593 = vld [vmem:[#allocation2 + $0xf18] sm:$0xff]
    %v594 = vld [vmem:[#allocation2 + $0xf20] sm:$0xff]
    %v595 = vld [vmem:[#allocation2 + $0xf28] sm:$0xff]
    %v596 = vld [vmem:[#allocation2 + $0xf30] sm:$0xff]
    %v597 = vld [vmem:[#allocation2 + $0xf38] sm:$0xff]
    %v598 = vld [vmem:[#allocation2 + $0xf40] sm:$0xff]
    %v599 = vld [vmem:[#allocation2 + $0xf48] sm:$0xff]
    %v600 = vld [vmem:[#allocation2 + $0xf50] sm:$0xff]
    %v601 = vld [vmem:[#allocation2 + $0xf58] sm:$0xff]
    %v602 = vld [vmem:[#allocation2 + $0xf60] sm:$0xff]
    %v603 = vld [vmem:[#allocation2 + $0xf68] sm:$0xff]
    %v604 = vld [vmem:[#allocation2 + $0xf70] sm:$0xff]
    %v605 = vld [vmem:[#allocation2 + $0xf78] sm:$0xff]
    %v606 = vld [vmem:[#allocation2 + $0xf80] sm:$0xff]
    %v607 = vld [vmem:[#allocation2 + $0xf88] sm:$0xff]
    %v608 = vld [vmem:[#allocation2 + $0xf90] sm:$0xff]
    %v609 = vld [vmem:[#allocation2 + $0xf98] sm:$0xff]
    %v610 = vld [vmem:[#allocation2 + $0xfa0] sm:$0xff]
    %v611 = vld [vmem:[#allocation2 + $0xfa8] sm:$0xff]
    %v612 = vld [vmem:[#allocation2 + $0xfb0] sm:$0xff]
    %v613 = vld [vmem:[#allocation2 + $0xfb8] sm:$0xff]
    %v614 = vld [vmem:[#allocation2 + $0xfc0] sm:$0xff]
    %v615 = vld [vmem:[#allocation2 + $0xfc8] sm:$0xff]
    %v616 = vld [vmem:[#allocation2 + $0xfd0] sm:$0xff]
    %v617 = vld [vmem:[#allocation2 + $0xfd8] sm:$0xff]
    %v618 = vld [vmem:[#allocation2 + $0xfe0] sm:$0xff]
    %v619 = vld [vmem:[#allocation2 + $0xfe8] sm:$0xff]
    %v620 = vld [vmem:[#allocation2 + $0xff0] sm:$0xff]
    %v621 = vld [vmem:[#allocation2 + $0xff8] sm:$0xff]
    %v622 = vld [vmem:[#allocation4] sm:$0xf]
    %v624 = vlaneseq
    %v625 = vshrl.u32 %v624, 7
    %v626 = vsub.s32 0, %v625
    %v627 = vrot.slane %v622, %v626
    %v628 = vlaneseq
    %v629 = vshrl.u32 %v628, 7
    %v630 = vsub.s32 1, %v629
    %v631 = vrot.slane %v622, %v630
    %v632 = vlaneseq
    %v633 = vshrl.u32 %v632, 7
    %v634 = vsub.s32 2, %v633
    %v635 = vrot.slane %v622, %v634
    %v636 = vlaneseq
    %v637 = vshrl.u32 %v636, 7
    %v638 = vsub.s32 3, %v637
    %v639 = vrot.slane %v622, %v638
    %644 = vmatprep.subr.mxu0 %v111
    %645 = vmatpush1.msra.mxu0 %v110
    %646 = vmatprep.subr.mxu0 %v115
    %647 = vmatpush1.msra.mxu0 %v114
    %648 = vmatprep.subr.mxu0 %v119
    %649 = vmatpush1.msra.mxu0 %v118
    %650 = vmatprep.subr.mxu0 %v123
    %651 = vmatpush1.msra.mxu0 %v122
    %652 = vmatprep.subr.mxu0 %v127
    %653 = vmatpush1.msra.mxu0 %v126
    %654 = vmatprep.subr.mxu0 %v131
    %655 = vmatpush1.msra.mxu0 %v130
    %656 = vmatprep.subr.mxu0 %v135
    %657 = vmatpush1.msra.mxu0 %v134
    %658 = vmatprep.subr.mxu0 %v139
    %659 = vmatpush1.msra.mxu0 %v138
    %660 = vmatprep.subr.mxu0 %v143
    %661 = vmatpush1.msra.mxu0 %v142
    %662 = vmatprep.subr.mxu0 %v147
    %663 = vmatpush1.msra.mxu0 %v146
    %664 = vmatprep.subr.mxu0 %v151
    %665 = vmatpush1.msra.mxu0 %v150
    %666 = vmatprep.subr.mxu0 %v155
    %667 = vmatpush1.msra.mxu0 %v154
    %668 = vmatprep.subr.mxu0 %v159
    %669 = vmatpush1.msra.mxu0 %v158
    %670 = vmatprep.subr.mxu0 %v163
    %671 = vmatpush1.msra.mxu0 %v162
    %672 = vmatprep.subr.mxu0 %v167
    %673 = vmatpush1.msra.mxu0 %v166
    %674 = vmatprep.subr.mxu0 %v171
    %675 = vmatpush1.msra.mxu0 %v170
    %676 = vmatprep.subr.mxu0 %v175
    %677 = vmatpush1.msra.mxu0 %v174
    %678 = vmatprep.subr.mxu0 %v179
    %679 = vmatpush1.msra.mxu0 %v178
    %680 = vmatprep.subr.mxu0 %v183
    %681 = vmatpush1.msra.mxu0 %v182
    %682 = vmatprep.subr.mxu0 %v187
    %683 = vmatpush1.msra.mxu0 %v186
    %684 = vmatprep.subr.mxu0 %v191
    %685 = vmatpush1.msra.mxu0 %v190
    %686 = vmatprep.subr.mxu0 %v195
    %687 = vmatpush1.msra.mxu0 %v194
    %688 = vmatprep.subr.mxu0 %v199
    %689 = vmatpush1.msra.mxu0 %v198
    %690 = vmatprep.subr.mxu0 %v203
    %691 = vmatpush1.msra.mxu0 %v202
    %692 = vmatprep.subr.mxu0 %v207
    %693 = vmatpush1.msra.mxu0 %v206
    %694 = vmatprep.subr.mxu0 %v211
    %695 = vmatpush1.msra.mxu0 %v210
    %696 = vmatprep.subr.mxu0 %v215
    %697 = vmatpush1.msra.mxu0 %v214
    %698 = vmatprep.subr.mxu0 %v219
    %699 = vmatpush1.msra.mxu0 %v218
    %700 = vmatprep.subr.mxu0 %v223
    %701 = vmatpush1.msra.mxu0 %v222
    %702 = vmatprep.subr.mxu0 %v227
    %703 = vmatpush1.msra.mxu0 %v226
    %704 = vmatprep.subr.mxu0 %v231
    %705 = vmatpush1.msra.mxu0 %v230
    %706 = vmatprep.subr.mxu0 %v235
    %707 = vmatpush1.msra.mxu0 %v234
    %708 = vmatprep.mubr.f32.mxu0 %v103
    %709 = vmatmul.mubr.f32.gmra.mrb[0].mxu0 %v102
    %v710 = vpop.f32.mrb[0].mxu0
    %v711 = vadd.f32 %v627, %v710
    %v712 = vpop.f32.mrb[0].mxu0
    %v713 = vadd.f32 %v631, %v712
    %714 = vdwg.mxu0
    %715 = vmatprep.subr.mxu0 %v239
    %716 = vmatpush1.msra.mxu0 %v238
    %717 = vmatprep.subr.mxu0 %v243
    %718 = vmatpush1.msra.mxu0 %v242
    %719 = vmatprep.subr.mxu0 %v247
    %720 = vmatpush1.msra.mxu0 %v246
    %721 = vmatprep.subr.mxu0 %v251
    %722 = vmatpush1.msra.mxu0 %v250
    %723 = vmatprep.subr.mxu0 %v255
    %724 = vmatpush1.msra.mxu0 %v254
    %725 = vmatprep.subr.mxu0 %v259
    %726 = vmatpush1.msra.mxu0 %v258
    %727 = vmatprep.subr.mxu0 %v263
    %728 = vmatpush1.msra.mxu0 %v262
    %729 = vmatprep.subr.mxu0 %v267
    %730 = vmatpush1.msra.mxu0 %v266
    %731 = vmatprep.subr.mxu0 %v271
    %732 = vmatpush1.msra.mxu0 %v270
    %733 = vmatprep.subr.mxu0 %v275
    %734 = vmatpush1.msra.mxu0 %v274
    %735 = vmatprep.subr.mxu0 %v279
    %736 = vmatpush1.msra.mxu0 %v278
    %737 = vmatprep.subr.mxu0 %v283
    %738 = vmatpush1.msra.mxu0 %v282
    %739 = vmatprep.subr.mxu0 %v287
    %740 = vmatpush1.msra.mxu0 %v286
    %741 = vmatprep.subr.mxu0 %v291
    %742 = vmatpush1.msra.mxu0 %v290
    %743 = vmatprep.subr.mxu0 %v295
    %744 = vmatpush1.msra.mxu0 %v294
    %745 = vmatprep.subr.mxu0 %v299
    %746 = vmatpush1.msra.mxu0 %v298
    %747 = vmatprep.subr.mxu0 %v303
    %748 = vmatpush1.msra.mxu0 %v302
    %749 = vmatprep.subr.mxu0 %v307
    %750 = vmatpush1.msra.mxu0 %v306
    %751 = vmatprep.subr.mxu0 %v311
    %752 = vmatpush1.msra.mxu0 %v310
    %753 = vmatprep.subr.mxu0 %v315
    %754 = vmatpush1.msra.mxu0 %v314
    %755 = vmatprep.subr.mxu0 %v319
    %756 = vmatpush1.msra.mxu0 %v318
    %757 = vmatprep.subr.mxu0 %v323
    %758 = vmatpush1.msra.mxu0 %v322
    %759 = vmatprep.subr.mxu0 %v327
    %760 = vmatpush1.msra.mxu0 %v326
    %761 = vmatprep.subr.mxu0 %v331
    %762 = vmatpush1.msra.mxu0 %v330
    %763 = vmatprep.subr.mxu0 %v335
    %764 = vmatpush1.msra.mxu0 %v334
    %765 = vmatprep.subr.mxu0 %v339
    %766 = vmatpush1.msra.mxu0 %v338
    %767 = vmatprep.subr.mxu0 %v343
    %768 = vmatpush1.msra.mxu0 %v342
    %769 = vmatprep.subr.mxu0 %v347
    %770 = vmatpush1.msra.mxu0 %v346
    %771 = vmatprep.subr.mxu0 %v351
    %772 = vmatpush1.msra.mxu0 %v350
    %773 = vmatprep.subr.mxu0 %v355
    %774 = vmatpush1.msra.mxu0 %v354
    %775 = vmatprep.subr.mxu0 %v359
    %776 = vmatpush1.msra.mxu0 %v358
    %777 = vmatprep.subr.mxu0 %v363
    %778 = vmatpush1.msra.mxu0 %v362
    %779 = vmatprep.mubr.f32.mxu0 %v105
    %780 = vmatmul.mubr.f32.gmra.mrb[0].mxu0 %v104
    %v781 = vpop.f32.mrb[0].mxu0
    %v782 = vadd.f32 %v711, %v781
    %v783 = vpop.f32.mrb[0].mxu0
    %v784 = vadd.f32 %v713, %v783
    %785 = vdwg.mxu0
    %786 = vmatprep.subr.mxu0 %v367
    %787 = vmatpush1.msra.mxu0 %v366
    %788 = vmatprep.subr.mxu0 %v371
    %789 = vmatpush1.msra.mxu0 %v370
    %790 = vmatprep.subr.mxu0 %v375
    %791 = vmatpush1.msra.mxu0 %v374
    %792 = vmatprep.subr.mxu0 %v379
    %793 = vmatpush1.msra.mxu0 %v378
    %794 = vmatprep.subr.mxu0 %v383
    %795 = vmatpush1.msra.mxu0 %v382
    %796 = vmatprep.subr.mxu0 %v387
    %797 = vmatpush1.msra.mxu0 %v386
    %798 = vmatprep.subr.mxu0 %v391
    %799 = vmatpush1.msra.mxu0 %v390
    %800 = vmatprep.subr.mxu0 %v395
    %801 = vmatpush1.msra.mxu0 %v394
    %802 = vmatprep.subr.mxu0 %v399
    %803 = vmatpush1.msra.mxu0 %v398
    %804 = vmatprep.subr.mxu0 %v403
    %805 = vmatpush1.msra.mxu0 %v402
    %806 = vmatprep.subr.mxu0 %v407
    %807 = vmatpush1.msra.mxu0 %v406
    %808 = vmatprep.subr.mxu0 %v411
    %809 = vmatpush1.msra.mxu0 %v410
    %810 = vmatprep.subr.mxu0 %v415
    %811 = vmatpush1.msra.mxu0 %v414
    %812 = vmatprep.subr.mxu0 %v419
    %813 = vmatpush1.msra.mxu0 %v418
    %814 = vmatprep.subr.mxu0 %v423
    %815 = vmatpush1.msra.mxu0 %v422
    %816 = vmatprep.subr.mxu0 %v427
    %817 = vmatpush1.msra.mxu0 %v426
    %818 = vmatprep.subr.mxu0 %v431
    %819 = vmatpush1.msra.mxu0 %v430
    %820 = vmatprep.subr.mxu0 %v435
    %821 = vmatpush1.msra.mxu0 %v434
    %822 = vmatprep.subr.mxu0 %v439
    %823 = vmatpush1.msra.mxu0 %v438
    %824 = vmatprep.subr.mxu0 %v443
    %825 = vmatpush1.msra.mxu0 %v442
    %826 = vmatprep.subr.mxu0 %v447
    %827 = vmatpush1.msra.mxu0 %v446
    %828 = vmatprep.subr.mxu0 %v451
    %829 = vmatpush1.msra.mxu0 %v450
    %830 = vmatprep.subr.mxu0 %v455
    %831 = vmatpush1.msra.mxu0 %v454
    %832 = vmatprep.subr.mxu0 %v459
    %833 = vmatpush1.msra.mxu0 %v458
    %834 = vmatprep.subr.mxu0 %v463
    %835 = vmatpush1.msra.mxu0 %v462
    %836 = vmatprep.subr.mxu0 %v467
    %837 = vmatpush1.msra.mxu0 %v466
    %838 = vmatprep.subr.mxu0 %v471
    %839 = vmatpush1.msra.mxu0 %v470
    %840 = vmatprep.subr.mxu0 %v475
    %841 = vmatpush1.msra.mxu0 %v474
    %842 = vmatprep.subr.mxu0 %v479
    %843 = vmatpush1.msra.mxu0 %v478
    %844 = vmatprep.subr.mxu0 %v483
    %845 = vmatpush1.msra.mxu0 %v482
    %846 = vmatprep.subr.mxu0 %v487
    %847 = vmatpush1.msra.mxu0 %v486
    %848 = vmatprep.subr.mxu0 %v491
    %849 = vmatpush1.msra.mxu0 %v490
    %850 = vmatprep.mubr.f32.mxu0 %v107
    %851 = vmatmul.mubr.f32.gmra.mrb[0].mxu0 %v106
    %v852 = vpop.f32.mrb[0].mxu0
    %v853 = vadd.f32 %v782, %v852
    %v854 = vpop.f32.mrb[0].mxu0
    %v855 = vadd.f32 %v784, %v854
    %856 = vdwg.mxu0
    %857 = vmatprep.subr.mxu0 %v495
    %858 = vmatpush1.msra.mxu0 %v494
    %859 = vmatprep.subr.mxu0 %v499
    %860 = vmatpush1.msra.mxu0 %v498
    %861 = vmatprep.subr.mxu0 %v503
    %862 = vmatpush1.msra.mxu0 %v502
    %863 = vmatprep.subr.mxu0 %v507
    %864 = vmatpush1.msra.mxu0 %v506
    %865 = vmatprep.subr.mxu0 %v511
    %866 = vmatpush1.msra.mxu0 %v510
    %867 = vmatprep.subr.mxu0 %v515
    %868 = vmatpush1.msra.mxu0 %v514
    %869 = vmatprep.subr.mxu0 %v519
    %870 = vmatpush1.msra.mxu0 %v518
    %871 = vmatprep.subr.mxu0 %v523
    %872 = vmatpush1.msra.mxu0 %v522
    %873 = vmatprep.subr.mxu0 %v527
    %874 = vmatpush1.msra.mxu0 %v526
    %875 = vmatprep.subr.mxu0 %v531
    %876 = vmatpush1.msra.mxu0 %v530
    %877 = vmatprep.subr.mxu0 %v535
    %878 = vmatpush1.msra.mxu0 %v534
    %879 = vmatprep.subr.mxu0 %v539
    %880 = vmatpush1.msra.mxu0 %v538
    %881 = vmatprep.subr.mxu0 %v543
    %882 = vmatpush1.msra.mxu0 %v542
    %883 = vmatprep.subr.mxu0 %v547
    %884 = vmatpush1.msra.mxu0 %v546
    %885 = vmatprep.subr.mxu0 %v551
    %886 = vmatpush1.msra.mxu0 %v550
    %887 = vmatprep.subr.mxu0 %v555
    %888 = vmatpush1.msra.mxu0 %v554
    %889 = vmatprep.subr.mxu0 %v559
    %890 = vmatpush1.msra.mxu0 %v558
    %891 = vmatprep.subr.mxu0 %v563
    %892 = vmatpush1.msra.mxu0 %v562
    %893 = vmatprep.subr.mxu0 %v567
    %894 = vmatpush1.msra.mxu0 %v566
    %895 = vmatprep.subr.mxu0 %v571
    %896 = vmatpush1.msra.mxu0 %v570
    %897 = vmatprep.subr.mxu0 %v575
    %898 = vmatpush1.msra.mxu0 %v574
    %899 = vmatprep.subr.mxu0 %v579
    %900 = vmatpush1.msra.mxu0 %v578
    %901 = vmatprep.subr.mxu0 %v583
    %902 = vmatpush1.msra.mxu0 %v582
    %903 = vmatprep.subr.mxu0 %v587
    %904 = vmatpush1.msra.mxu0 %v586
    %905 = vmatprep.subr.mxu0 %v591
    %906 = vmatpush1.msra.mxu0 %v590
    %907 = vmatprep.subr.mxu0 %v595
    %908 = vmatpush1.msra.mxu0 %v594
    %909 = vmatprep.subr.mxu0 %v599
    %910 = vmatpush1.msra.mxu0 %v598
    %911 = vmatprep.subr.mxu0 %v603
    %912 = vmatpush1.msra.mxu0 %v602
    %913 = vmatprep.subr.mxu0 %v607
    %914 = vmatpush1.msra.mxu0 %v606
    %915 = vmatprep.subr.mxu0 %v611
    %916 = vmatpush1.msra.mxu0 %v610
    %917 = vmatprep.subr.mxu0 %v615
    %918 = vmatpush1.msra.mxu0 %v614
    %919 = vmatprep.subr.mxu0 %v619
    %920 = vmatpush1.msra.mxu0 %v618
    %921 = vmatprep.mubr.f32.mxu0 %v109
    %922 = vmatmul.mubr.f32.gmra.mrb[0].mxu0 %v108
    %v923 = vpop.f32.mrb[0].mxu0
    %v924 = vadd.f32 %v853, %v923
    %v925 = vpop.f32.mrb[0].mxu0
    %v926 = vadd.f32 %v855, %v925
    %927 = vdwg.mxu0
    %928 = vmatprep.subr.mxu0 %v113
    %929 = vmatpush1.msra.mxu0 %v112
    %930 = vmatprep.subr.mxu0 %v117
    %931 = vmatpush1.msra.mxu0 %v116
    %932 = vmatprep.subr.mxu0 %v121
    %933 = vmatpush1.msra.mxu0 %v120
    %934 = vmatprep.subr.mxu0 %v125
    %935 = vmatpush1.msra.mxu0 %v124
    %936 = vmatprep.subr.mxu0 %v129
    %937 = vmatpush1.msra.mxu0 %v128
    %938 = vmatprep.subr.mxu0 %v133
    %939 = vmatpush1.msra.mxu0 %v132
    %940 = vmatprep.subr.mxu0 %v137
    %941 = vmatpush1.msra.mxu0 %v136
    %942 = vmatprep.subr.mxu0 %v141
    %943 = vmatpush1.msra.mxu0 %v140
    %944 = vmatprep.subr.mxu0 %v145
    %945 = vmatpush1.msra.mxu0 %v144
    %946 = vmatprep.subr.mxu0 %v149
    %947 = vmatpush1.msra.mxu0 %v148
    %948 = vmatprep.subr.mxu0 %v153
    %949 = vmatpush1.msra.mxu0 %v152
    %950 = vmatprep.subr.mxu0 %v157
    %951 = vmatpush1.msra.mxu0 %v156
    %952 = vmatprep.subr.mxu0 %v161
    %953 = vmatpush1.msra.mxu0 %v160
    %954 = vmatprep.subr.mxu0 %v165
    %955 = vmatpush1.msra.mxu0 %v164
    %956 = vmatprep.subr.mxu0 %v169
    %957 = vmatpush1.msra.mxu0 %v168
    %958 = vmatprep.subr.mxu0 %v173
    %959 = vmatpush1.msra.mxu0 %v172
    %960 = vmatprep.subr.mxu0 %v177
    %961 = vmatpush1.msra.mxu0 %v176
    %962 = vmatprep.subr.mxu0 %v181
    %963 = vmatpush1.msra.mxu0 %v180
    %964 = vmatprep.subr.mxu0 %v185
    %965 = vmatpush1.msra.mxu0 %v184
    %966 = vmatprep.subr.mxu0 %v189
    %967 = vmatpush1.msra.mxu0 %v188
    %968 = vmatprep.subr.mxu0 %v193
    %969 = vmatpush1.msra.mxu0 %v192
    %970 = vmatprep.subr.mxu0 %v197
    %971 = vmatpush1.msra.mxu0 %v196
    %972 = vmatprep.subr.mxu0 %v201
    %973 = vmatpush1.msra.mxu0 %v200
    %974 = vmatprep.subr.mxu0 %v205
    %975 = vmatpush1.msra.mxu0 %v204
    %976 = vmatprep.subr.mxu0 %v209
    %977 = vmatpush1.msra.mxu0 %v208
    %978 = vmatprep.subr.mxu0 %v213
    %979 = vmatpush1.msra.mxu0 %v212
    %980 = vmatprep.subr.mxu0 %v217
    %981 = vmatpush1.msra.mxu0 %v216
    %982 = vmatprep.subr.mxu0 %v221
    %983 = vmatpush1.msra.mxu0 %v220
    %984 = vmatprep.subr.mxu0 %v225
    %985 = vmatpush1.msra.mxu0 %v224
    %986 = vmatprep.subr.mxu0 %v229
    %987 = vmatpush1.msra.mxu0 %v228
    %988 = vmatprep.subr.mxu0 %v233
    %989 = vmatpush1.msra.mxu0 %v232
    %990 = vmatprep.subr.mxu0 %v237
    %991 = vmatpush1.msra.mxu0 %v236
    %992 = vmatprep.mubr.f32.mxu0 %v103
    %993 = vmatmul.mubr.f32.gmra.mrb[0].mxu0 %v102
    %v994 = vpop.f32.mrb[0].mxu0
    %v995 = vadd.f32 %v635, %v994
    %v996 = vpop.f32.mrb[0].mxu0
    %v997 = vadd.f32 %v639, %v996
    %998 = vdwg.mxu0
    %999 = vmatprep.subr.mxu0 %v241
    %1000 = vmatpush1.msra.mxu0 %v240
    %1001 = vmatprep.subr.mxu0 %v245
    %1002 = vmatpush1.msra.mxu0 %v244
    %1003 = vmatprep.subr.mxu0 %v249
    %1004 = vmatpush1.msra.mxu0 %v248
    %1005 = vmatprep.subr.mxu0 %v253
    %1006 = vmatpush1.msra.mxu0 %v252
    %1007 = vmatprep.subr.mxu0 %v257
    %1008 = vmatpush1.msra.mxu0 %v256
    %1009 = vmatprep.subr.mxu0 %v261
    %1010 = vmatpush1.msra.mxu0 %v260
    %1011 = vmatprep.subr.mxu0 %v265
    %1012 = vmatpush1.msra.mxu0 %v264
    %1013 = vmatprep.subr.mxu0 %v269
    %1014 = vmatpush1.msra.mxu0 %v268
    %1015 = vmatprep.subr.mxu0 %v273
    %1016 = vmatpush1.msra.mxu0 %v272
    %1017 = vmatprep.subr.mxu0 %v277
    %1018 = vmatpush1.msra.mxu0 %v276
    %1019 = vmatprep.subr.mxu0 %v281
    %1020 = vmatpush1.msra.mxu0 %v280
    %1021 = vmatprep.subr.mxu0 %v285
    %1022 = vmatpush1.msra.mxu0 %v284
    %1023 = vmatprep.subr.mxu0 %v289
    %1024 = vmatpush1.msra.mxu0 %v288
    %1025 = vmatprep.subr.mxu0 %v293
    %1026 = vmatpush1.msra.mxu0 %v292
    %1027 = vmatprep.subr.mxu0 %v297
    %1028 = vmatpush1.msra.mxu0 %v296
    %1029 = vmatprep.subr.mxu0 %v301
    %1030 = vmatpush1.msra.mxu0 %v300
    %1031 = vmatprep.subr.mxu0 %v305
    %1032 = vmatpush1.msra.mxu0 %v304
    %1033 = vmatprep.subr.mxu0 %v309
    %1034 = vmatpush1.msra.mxu0 %v308
    %1035 = vmatprep.subr.mxu0 %v313
    %1036 = vmatpush1.msra.mxu0 %v312
    %1037 = vmatprep.subr.mxu0 %v317
    %1038 = vmatpush1.msra.mxu0 %v316
    %1039 = vmatprep.subr.mxu0 %v321
    %1040 = vmatpush1.msra.mxu0 %v320
    %1041 = vmatprep.subr.mxu0 %v325
    %1042 = vmatpush1.msra.mxu0 %v324
    %1043 = vmatprep.subr.mxu0 %v329
    %1044 = vmatpush1.msra.mxu0 %v328
    %1045 = vmatprep.subr.mxu0 %v333
    %1046 = vmatpush1.msra.mxu0 %v332
    %1047 = vmatprep.subr.mxu0 %v337
    %1048 = vmatpush1.msra.mxu0 %v336
    %1049 = vmatprep.subr.mxu0 %v341
    %1050 = vmatpush1.msra.mxu0 %v340
    %1051 = vmatprep.subr.mxu0 %v345
    %1052 = vmatpush1.msra.mxu0 %v344
    %1053 = vmatprep.subr.mxu0 %v349
    %1054 = vmatpush1.msra.mxu0 %v348
    %1055 = vmatprep.subr.mxu0 %v353
    %1056 = vmatpush1.msra.mxu0 %v352
    %1057 = vmatprep.subr.mxu0 %v357
    %1058 = vmatpush1.msra.mxu0 %v356
    %1059 = vmatprep.subr.mxu0 %v361
    %1060 = vmatpush1.msra.mxu0 %v360
    %1061 = vmatprep.subr.mxu0 %v365
    %1062 = vmatpush1.msra.mxu0 %v364
    %1063 = vmatprep.mubr.f32.mxu0 %v105
    %1064 = vmatmul.mubr.f32.gmra.mrb[0].mxu0 %v104
    %v1065 = vpop.f32.mrb[0].mxu0
    %v1066 = vadd.f32 %v995, %v1065
    %v1067 = vpop.f32.mrb[0].mxu0
    %v1068 = vadd.f32 %v997, %v1067
    %1069 = vdwg.mxu0
    %1070 = vmatprep.subr.mxu0 %v369
    %1071 = vmatpush1.msra.mxu0 %v368
    %1072 = vmatprep.subr.mxu0 %v373
    %1073 = vmatpush1.msra.mxu0 %v372
    %1074 = vmatprep.subr.mxu0 %v377
    %1075 = vmatpush1.msra.mxu0 %v376
    %1076 = vmatprep.subr.mxu0 %v381
    %1077 = vmatpush1.msra.mxu0 %v380
    %1078 = vmatprep.subr.mxu0 %v385
    %1079 = vmatpush1.msra.mxu0 %v384
    %1080 = vmatprep.subr.mxu0 %v389
    %1081 = vmatpush1.msra.mxu0 %v388
    %1082 = vmatprep.subr.mxu0 %v393
    %1083 = vmatpush1.msra.mxu0 %v392
    %1084 = vmatprep.subr.mxu0 %v397
    %1085 = vmatpush1.msra.mxu0 %v396
    %1086 = vmatprep.subr.mxu0 %v401
    %1087 = vmatpush1.msra.mxu0 %v400
    %1088 = vmatprep.subr.mxu0 %v405
    %1089 = vmatpush1.msra.mxu0 %v404
    %1090 = vmatprep.subr.mxu0 %v409
    %1091 = vmatpush1.msra.mxu0 %v408
    %1092 = vmatprep.subr.mxu0 %v413
    %1093 = vmatpush1.msra.mxu0 %v412
    %1094 = vmatprep.subr.mxu0 %v417
    %1095 = vmatpush1.msra.mxu0 %v416
    %1096 = vmatprep.subr.mxu0 %v421
    %1097 = vmatpush1.msra.mxu0 %v420
    %1098 = vmatprep.subr.mxu0 %v425
    %1099 = vmatpush1.msra.mxu0 %v424
    %1100 = vmatprep.subr.mxu0 %v429
    %1101 = vmatpush1.msra.mxu0 %v428
    %1102 = vmatprep.subr.mxu0 %v433
    %1103 = vmatpush1.msra.mxu0 %v432
    %1104 = vmatprep.subr.mxu0 %v437
    %1105 = vmatpush1.msra.mxu0 %v436
    %1106 = vmatprep.subr.mxu0 %v441
    %1107 = vmatpush1.msra.mxu0 %v440
    %1108 = vmatprep.subr.mxu0 %v445
    %1109 = vmatpush1.msra.mxu0 %v444
    %1110 = vmatprep.subr.mxu0 %v449
    %1111 = vmatpush1.msra.mxu0 %v448
    %1112 = vmatprep.subr.mxu0 %v453
    %1113 = vmatpush1.msra.mxu0 %v452
    %1114 = vmatprep.subr.mxu0 %v457
    %1115 = vmatpush1.msra.mxu0 %v456
    %1116 = vmatprep.subr.mxu0 %v461
    %1117 = vmatpush1.msra.mxu0 %v460
    %1118 = vmatprep.subr.mxu0 %v465
    %1119 = vmatpush1.msra.mxu0 %v464
    %1120 = vmatprep.subr.mxu0 %v469
    %1121 = vmatpush1.msra.mxu0 %v468
    %1122 = vmatprep.subr.mxu0 %v473
    %1123 = vmatpush1.msra.mxu0 %v472
    %1124 = vmatprep.subr.mxu0 %v477
    %1125 = vmatpush1.msra.mxu0 %v476
    %1126 = vmatprep.subr.mxu0 %v481
    %1127 = vmatpush1.msra.mxu0 %v480
    %1128 = vmatprep.subr.mxu0 %v485
    %1129 = vmatpush1.msra.mxu0 %v484
    %1130 = vmatprep.subr.mxu0 %v489
    %1131 = vmatpush1.msra.mxu0 %v488
    %1132 = vmatprep.subr.mxu0 %v493
    %1133 = vmatpush1.msra.mxu0 %v492
    %1134 = vmatprep.mubr.f32.mxu0 %v107
    %1135 = vmatmul.mubr.f32.gmra.mrb[0].mxu0 %v106
    %v1136 = vpop.f32.mrb[0].mxu0
    %v1137 = vadd.f32 %v1066, %v1136
    %v1138 = vpop.f32.mrb[0].mxu0
    %v1139 = vadd.f32 %v1068, %v1138
    %1140 = vdwg.mxu0
    %1141 = vmatprep.subr.mxu0 %v497
    %1142 = vmatpush1.msra.mxu0 %v496
    %1143 = vmatprep.subr.mxu0 %v501
    %1144 = vmatpush1.msra.mxu0 %v500
    %1145 = vmatprep.subr.mxu0 %v505
    %1146 = vmatpush1.msra.mxu0 %v504
    %1147 = vmatprep.subr.mxu0 %v509
    %1148 = vmatpush1.msra.mxu0 %v508
    %1149 = vmatprep.subr.mxu0 %v513
    %1150 = vmatpush1.msra.mxu0 %v512
    %1151 = vmatprep.subr.mxu0 %v517
    %1152 = vmatpush1.msra.mxu0 %v516
    %1153 = vmatprep.subr.mxu0 %v521
    %1154 = vmatpush1.msra.mxu0 %v520
    %1155 = vmatprep.subr.mxu0 %v525
    %1156 = vmatpush1.msra.mxu0 %v524
    %1157 = vmatprep.subr.mxu0 %v529
    %1158 = vmatpush1.msra.mxu0 %v528
    %1159 = vmatprep.subr.mxu0 %v533
    %1160 = vmatpush1.msra.mxu0 %v532
    %1161 = vmatprep.subr.mxu0 %v537
    %1162 = vmatpush1.msra.mxu0 %v536
    %1163 = vmatprep.subr.mxu0 %v541
    %1164 = vmatpush1.msra.mxu0 %v540
    %1165 = vmatprep.subr.mxu0 %v545
    %1166 = vmatpush1.msra.mxu0 %v544
    %1167 = vmatprep.subr.mxu0 %v549
    %1168 = vmatpush1.msra.mxu0 %v548
    %1169 = vmatprep.subr.mxu0 %v553
    %1170 = vmatpush1.msra.mxu0 %v552
    %1171 = vmatprep.subr.mxu0 %v557
    %1172 = vmatpush1.msra.mxu0 %v556
    %1173 = vmatprep.subr.mxu0 %v561
    %1174 = vmatpush1.msra.mxu0 %v560
    %1175 = vmatprep.subr.mxu0 %v565
    %1176 = vmatpush1.msra.mxu0 %v564
    %1177 = vmatprep.subr.mxu0 %v569
    %1178 = vmatpush1.msra.mxu0 %v568
    %1179 = vmatprep.subr.mxu0 %v573
    %1180 = vmatpush1.msra.mxu0 %v572
    %1181 = vmatprep.subr.mxu0 %v577
    %1182 = vmatpush1.msra.mxu0 %v576
    %1183 = vmatprep.subr.mxu0 %v581
    %1184 = vmatpush1.msra.mxu0 %v580
    %1185 = vmatprep.subr.mxu0 %v585
    %1186 = vmatpush1.msra.mxu0 %v584
    %1187 = vmatprep.subr.mxu0 %v589
    %1188 = vmatpush1.msra.mxu0 %v588
    %1189 = vmatprep.subr.mxu0 %v593
    %1190 = vmatpush1.msra.mxu0 %v592
    %1191 = vmatprep.subr.mxu0 %v597
    %1192 = vmatpush1.msra.mxu0 %v596
    %1193 = vmatprep.subr.mxu0 %v601
    %1194 = vmatpush1.msra.mxu0 %v600
    %1195 = vmatprep.subr.mxu0 %v605
    %1196 = vmatpush1.msra.mxu0 %v604
    %1197 = vmatprep.subr.mxu0 %v609
    %1198 = vmatpush1.msra.mxu0 %v608
    %1199 = vmatprep.subr.mxu0 %v613
    %1200 = vmatpush1.msra.mxu0 %v612
    %1201 = vmatprep.subr.mxu0 %v617
    %1202 = vmatpush1.msra.mxu0 %v616
    %1203 = vmatprep.subr.mxu0 %v621
    %1204 = vmatpush1.msra.mxu0 %v620
    %1205 = vmatprep.mubr.f32.mxu0 %v109
    %1206 = vmatmul.mubr.f32.gmra.mrb[0].mxu0 %v108
    %v1207 = vpop.f32.mrb[0].mxu0
    %v1208 = vadd.f32 %v1137, %v1207
    %v1209 = vpop.f32.mrb[0].mxu0
    %v1210 = vadd.f32 %v1139, %v1209
    %1211 = vdwg.mxu0
    %v1212 = vmax.f32 %v924, 0.0
    %v1213 = vmax.f32 %v926, 0.0
    %v1214 = vmax.f32 %v1208, 0.0
    %v1215 = vmax.f32 %v1210, 0.0
    %v1216 = vld [vmem:[#allocation6] sm:$0xff]
    %v1217 = vld [vmem:[#allocation6 + $0x8] sm:$0xff]
    %v1218 = vld [vmem:[#allocation6 + $0x10] sm:$0xff]
    %v1219 = vld [vmem:[#allocation6 + $0x18] sm:$0xff]
    %v1220 = vld [vmem:[#allocation6 + $0x20] sm:$0xff]
    %v1221 = vld [vmem:[#allocation6 + $0x28] sm:$0xff]
    %v1222 = vld [vmem:[#allocation6 + $0x30] sm:$0xff]
    %v1223 = vld [vmem:[#allocation6 + $0x38] sm:$0xff]
    %v1224 = vld [vmem:[#allocation6 + $0x40] sm:$0xff]
    %v1225 = vld [vmem:[#allocation6 + $0x48] sm:$0xff]
    %v1226 = vld [vmem:[#allocation6 + $0x50] sm:$0xff]
    %v1227 = vld [vmem:[#allocation6 + $0x58] sm:$0xff]
    %v1228 = vld [vmem:[#allocation6 + $0x60] sm:$0xff]
    %v1229 = vld [vmem:[#allocation6 + $0x68] sm:$0xff]
    %v1230 = vld [vmem:[#allocation6 + $0x70] sm:$0xff]
    %v1231 = vld [vmem:[#allocation6 + $0x78] sm:$0xff]
    %v1232 = vld [vmem:[#allocation6 + $0x80] sm:$0xff]
    %v1233 = vld [vmem:[#allocation6 + $0x88] sm:$0xff]
    %v1234 = vld [vmem:[#allocation6 + $0x90] sm:$0xff]
    %v1235 = vld [vmem:[#allocation6 + $0x98] sm:$0xff]
    %v1236 = vld [vmem:[#allocation6 + $0xa0] sm:$0xff]
    %v1237 = vld [vmem:[#allocation6 + $0xa8] sm:$0xff]
    %v1238 = vld [vmem:[#allocation6 + $0xb0] sm:$0xff]
    %v1239 = vld [vmem:[#allocation6 + $0xb8] sm:$0xff]
    %v1240 = vld [vmem:[#allocation6 + $0xc0] sm:$0xff]
    %v1241 = vld [vmem:[#allocation6 + $0xc8] sm:$0xff]
    %v1242 = vld [vmem:[#allocation6 + $0xd0] sm:$0xff]
    %v1243 = vld [vmem:[#allocation6 + $0xd8] sm:$0xff]
    %v1244 = vld [vmem:[#allocation6 + $0xe0] sm:$0xff]
    %v1245 = vld [vmem:[#allocation6 + $0xe8] sm:$0xff]
    %v1246 = vld [vmem:[#allocation6 + $0xf0] sm:$0xff]
    %v1247 = vld [vmem:[#allocation6 + $0xf8] sm:$0xff]
    %v1248 = vld [vmem:[#allocation6 + $0x100] sm:$0xff]
    %v1249 = vld [vmem:[#allocation6 + $0x108] sm:$0xff]
    %v1250 = vld [vmem:[#allocation6 + $0x110] sm:$0xff]
    %v1251 = vld [vmem:[#allocation6 + $0x118] sm:$0xff]
    %v1252 = vld [vmem:[#allocation6 + $0x120] sm:$0xff]
    %v1253 = vld [vmem:[#allocation6 + $0x128] sm:$0xff]
    %v1254 = vld [vmem:[#allocation6 + $0x130] sm:$0xff]
    %v1255 = vld [vmem:[#allocation6 + $0x138] sm:$0xff]
    %v1256 = vld [vmem:[#allocation6 + $0x140] sm:$0xff]
    %v1257 = vld [vmem:[#allocation6 + $0x148] sm:$0xff]
    %v1258 = vld [vmem:[#allocation6 + $0x150] sm:$0xff]
    %v1259 = vld [vmem:[#allocation6 + $0x158] sm:$0xff]
    %v1260 = vld [vmem:[#allocation6 + $0x160] sm:$0xff]
    %v1261 = vld [vmem:[#allocation6 + $0x168] sm:$0xff]
    %v1262 = vld [vmem:[#allocation6 + $0x170] sm:$0xff]
    %v1263 = vld [vmem:[#allocation6 + $0x178] sm:$0xff]
    %v1264 = vld [vmem:[#allocation6 + $0x180] sm:$0xff]
    %v1265 = vld [vmem:[#allocation6 + $0x188] sm:$0xff]
    %v1266 = vld [vmem:[#allocation6 + $0x190] sm:$0xff]
    %v1267 = vld [vmem:[#allocation6 + $0x198] sm:$0xff]
    %v1268 = vld [vmem:[#allocation6 + $0x1a0] sm:$0xff]
    %v1269 = vld [vmem:[#allocation6 + $0x1a8] sm:$0xff]
    %v1270 = vld [vmem:[#allocation6 + $0x1b0] sm:$0xff]
    %v1271 = vld [vmem:[#allocation6 + $0x1b8] sm:$0xff]
    %v1272 = vld [vmem:[#allocation6 + $0x1c0] sm:$0xff]
    %v1273 = vld [vmem:[#allocation6 + $0x1c8] sm:$0xff]
    %v1274 = vld [vmem:[#allocation6 + $0x1d0] sm:$0xff]
    %v1275 = vld [vmem:[#allocation6 + $0x1d8] sm:$0xff]
    %v1276 = vld [vmem:[#allocation6 + $0x1e0] sm:$0xff]
    %v1277 = vld [vmem:[#allocation6 + $0x1e8] sm:$0xff]
    %v1278 = vld [vmem:[#allocation6 + $0x1f0] sm:$0xff]
    %v1279 = vld [vmem:[#allocation6 + $0x1f8] sm:$0xff]
    %v1280 = vld [vmem:[#allocation6 + $0x200] sm:$0xff]
    %v1281 = vld [vmem:[#allocation6 + $0x208] sm:$0xff]
    %v1282 = vld [vmem:[#allocation6 + $0x210] sm:$0xff]
    %v1283 = vld [vmem:[#allocation6 + $0x218] sm:$0xff]
    %v1284 = vld [vmem:[#allocation6 + $0x220] sm:$0xff]
    %v1285 = vld [vmem:[#allocation6 + $0x228] sm:$0xff]
    %v1286 = vld [vmem:[#allocation6 + $0x230] sm:$0xff]
    %v1287 = vld [vmem:[#allocation6 + $0x238] sm:$0xff]
    %v1288 = vld [vmem:[#allocation6 + $0x240] sm:$0xff]
    %v1289 = vld [vmem:[#allocation6 + $0x248] sm:$0xff]
    %v1290 = vld [vmem:[#allocation6 + $0x250] sm:$0xff]
    %v1291 = vld [vmem:[#allocation6 + $0x258] sm:$0xff]
    %v1292 = vld [vmem:[#allocation6 + $0x260] sm:$0xff]
    %v1293 = vld [vmem:[#allocation6 + $0x268] sm:$0xff]
    %v1294 = vld [vmem:[#allocation6 + $0x270] sm:$0xff]
    %v1295 = vld [vmem:[#allocation6 + $0x278] sm:$0xff]
    %v1296 = vld [vmem:[#allocation6 + $0x280] sm:$0xff]
    %v1297 = vld [vmem:[#allocation6 + $0x288] sm:$0xff]
    %v1298 = vld [vmem:[#allocation6 + $0x290] sm:$0xff]
    %v1299 = vld [vmem:[#allocation6 + $0x298] sm:$0xff]
    %v1300 = vld [vmem:[#allocation6 + $0x2a0] sm:$0xff]
    %v1301 = vld [vmem:[#allocation6 + $0x2a8] sm:$0xff]
    %v1302 = vld [vmem:[#allocation6 + $0x2b0] sm:$0xff]
    %v1303 = vld [vmem:[#allocation6 + $0x2b8] sm:$0xff]
    %v1304 = vld [vmem:[#allocation6 + $0x2c0] sm:$0xff]
    %v1305 = vld [vmem:[#allocation6 + $0x2c8] sm:$0xff]
    %v1306 = vld [vmem:[#allocation6 + $0x2d0] sm:$0xff]
    %v1307 = vld [vmem:[#allocation6 + $0x2d8] sm:$0xff]
    %v1308 = vld [vmem:[#allocation6 + $0x2e0] sm:$0xff]
    %v1309 = vld [vmem:[#allocation6 + $0x2e8] sm:$0xff]
    %v1310 = vld [vmem:[#allocation6 + $0x2f0] sm:$0xff]
    %v1311 = vld [vmem:[#allocation6 + $0x2f8] sm:$0xff]
    %v1312 = vld [vmem:[#allocation6 + $0x300] sm:$0xff]
    %v1313 = vld [vmem:[#allocation6 + $0x308] sm:$0xff]
    %v1314 = vld [vmem:[#allocation6 + $0x310] sm:$0xff]
    %v1315 = vld [vmem:[#allocation6 + $0x318] sm:$0xff]
    %v1316 = vld [vmem:[#allocation6 + $0x320] sm:$0xff]
    %v1317 = vld [vmem:[#allocation6 + $0x328] sm:$0xff]
    %v1318 = vld [vmem:[#allocation6 + $0x330] sm:$0xff]
    %v1319 = vld [vmem:[#allocation6 + $0x338] sm:$0xff]
    %v1320 = vld [vmem:[#allocation6 + $0x340] sm:$0xff]
    %v1321 = vld [vmem:[#allocation6 + $0x348] sm:$0xff]
    %v1322 = vld [vmem:[#allocation6 + $0x350] sm:$0xff]
    %v1323 = vld [vmem:[#allocation6 + $0x358] sm:$0xff]
    %v1324 = vld [vmem:[#allocation6 + $0x360] sm:$0xff]
    %v1325 = vld [vmem:[#allocation6 + $0x368] sm:$0xff]
    %v1326 = vld [vmem:[#allocation6 + $0x370] sm:$0xff]
    %v1327 = vld [vmem:[#allocation6 + $0x378] sm:$0xff]
    %v1328 = vld [vmem:[#allocation6 + $0x380] sm:$0xff]
    %v1329 = vld [vmem:[#allocation6 + $0x388] sm:$0xff]
    %v1330 = vld [vmem:[#allocation6 + $0x390] sm:$0xff]
    %v1331 = vld [vmem:[#allocation6 + $0x398] sm:$0xff]
    %v1332 = vld [vmem:[#allocation6 + $0x3a0] sm:$0xff]
    %v1333 = vld [vmem:[#allocation6 + $0x3a8] sm:$0xff]
    %v1334 = vld [vmem:[#allocation6 + $0x3b0] sm:$0xff]
    %v1335 = vld [vmem:[#allocation6 + $0x3b8] sm:$0xff]
    %v1336 = vld [vmem:[#allocation6 + $0x3c0] sm:$0xff]
    %v1337 = vld [vmem:[#allocation6 + $0x3c8] sm:$0xff]
    %v1338 = vld [vmem:[#allocation6 + $0x3d0] sm:$0xff]
    %v1339 = vld [vmem:[#allocation6 + $0x3d8] sm:$0xff]
    %v1340 = vld [vmem:[#allocation6 + $0x3e0] sm:$0xff]
    %v1341 = vld [vmem:[#allocation6 + $0x3e8] sm:$0xff]
    %v1342 = vld [vmem:[#allocation6 + $0x3f0] sm:$0xff]
    %v1343 = vld [vmem:[#allocation6 + $0x3f8] sm:$0xff]
    %v1344 = vld [vmem:[#allocation7] sm:$0x3]
    %v1346 = vlaneseq
    %v1347 = vshrl.u32 %v1346, 7
    %v1348 = vsub.s32 0, %v1347
    %v1349 = vrot.slane %v1344, %v1348
    %v1350 = vlaneseq
    %v1351 = vshrl.u32 %v1350, 7
    %v1352 = vsub.s32 1, %v1351
    %v1353 = vrot.slane %v1344, %v1352
    %1356 = vmatprep.subr.mxu0 %v1217
    %1357 = vmatpush1.msra.mxu0 %v1216
    %1358 = vmatprep.subr.mxu0 %v1219
    %1359 = vmatpush1.msra.mxu0 %v1218
    %1360 = vmatprep.subr.mxu0 %v1221
    %1361 = vmatpush1.msra.mxu0 %v1220
    %1362 = vmatprep.subr.mxu0 %v1223
    %1363 = vmatpush1.msra.mxu0 %v1222
    %1364 = vmatprep.subr.mxu0 %v1225
    %1365 = vmatpush1.msra.mxu0 %v1224
    %1366 = vmatprep.subr.mxu0 %v1227
    %1367 = vmatpush1.msra.mxu0 %v1226
    %1368 = vmatprep.subr.mxu0 %v1229
    %1369 = vmatpush1.msra.mxu0 %v1228
    %1370 = vmatprep.subr.mxu0 %v1231
    %1371 = vmatpush1.msra.mxu0 %v1230
    %1372 = vmatprep.subr.mxu0 %v1233
    %1373 = vmatpush1.msra.mxu0 %v1232
    %1374 = vmatprep.subr.mxu0 %v1235
    %1375 = vmatpush1.msra.mxu0 %v1234
    %1376 = vmatprep.subr.mxu0 %v1237
    %1377 = vmatpush1.msra.mxu0 %v1236
    %1378 = vmatprep.subr.mxu0 %v1239
    %1379 = vmatpush1.msra.mxu0 %v1238
    %1380 = vmatprep.subr.mxu0 %v1241
    %1381 = vmatpush1.msra.mxu0 %v1240
    %1382 = vmatprep.subr.mxu0 %v1243
    %1383 = vmatpush1.msra.mxu0 %v1242
    %1384 = vmatprep.subr.mxu0 %v1245
    %1385 = vmatpush1.msra.mxu0 %v1244
    %1386 = vmatprep.subr.mxu0 %v1247
    %1387 = vmatpush1.msra.mxu0 %v1246
    %1388 = vmatprep.subr.mxu0 %v1249
    %1389 = vmatpush1.msra.mxu0 %v1248
    %1390 = vmatprep.subr.mxu0 %v1251
    %1391 = vmatpush1.msra.mxu0 %v1250
    %1392 = vmatprep.subr.mxu0 %v1253
    %1393 = vmatpush1.msra.mxu0 %v1252
    %1394 = vmatprep.subr.mxu0 %v1255
    %1395 = vmatpush1.msra.mxu0 %v1254
    %1396 = vmatprep.subr.mxu0 %v1257
    %1397 = vmatpush1.msra.mxu0 %v1256
    %1398 = vmatprep.subr.mxu0 %v1259
    %1399 = vmatpush1.msra.mxu0 %v1258
    %1400 = vmatprep.subr.mxu0 %v1261
    %1401 = vmatpush1.msra.mxu0 %v1260
    %1402 = vmatprep.subr.mxu0 %v1263
    %1403 = vmatpush1.msra.mxu0 %v1262
    %1404 = vmatprep.subr.mxu0 %v1265
    %1405 = vmatpush1.msra.mxu0 %v1264
    %1406 = vmatprep.subr.mxu0 %v1267
    %1407 = vmatpush1.msra.mxu0 %v1266
    %1408 = vmatprep.subr.mxu0 %v1269
    %1409 = vmatpush1.msra.mxu0 %v1268
    %1410 = vmatprep.subr.mxu0 %v1271
    %1411 = vmatpush1.msra.mxu0 %v1270
    %1412 = vmatprep.subr.mxu0 %v1273
    %1413 = vmatpush1.msra.mxu0 %v1272
    %1414 = vmatprep.subr.mxu0 %v1275
    %1415 = vmatpush1.msra.mxu0 %v1274
    %1416 = vmatprep.subr.mxu0 %v1277
    %1417 = vmatpush1.msra.mxu0 %v1276
    %1418 = vmatprep.subr.mxu0 %v1279
    %1419 = vmatpush1.msra.mxu0 %v1278
    %1420 = vmatprep.mubr.f32.mxu0 %v1213
    %1421 = vmatmul.mubr.f32.gmra.mrb[0].mxu0 %v1212
    %v1422 = vpop.f32.mrb[0].mxu0
    %v1423 = vadd.f32 %v1349, %v1422
    %v1424 = vpop.f32.mrb[0].mxu0
    %v1425 = vadd.f32 %v1353, %v1424
    %1426 = vdwg.mxu0
    %1427 = vmatprep.subr.mxu0 %v1281
    %1428 = vmatpush1.msra.mxu0 %v1280
    %1429 = vmatprep.subr.mxu0 %v1283
    %1430 = vmatpush1.msra.mxu0 %v1282
    %1431 = vmatprep.subr.mxu0 %v1285
    %1432 = vmatpush1.msra.mxu0 %v1284
    %1433 = vmatprep.subr.mxu0 %v1287
    %1434 = vmatpush1.msra.mxu0 %v1286
    %1435 = vmatprep.subr.mxu0 %v1289
    %1436 = vmatpush1.msra.mxu0 %v1288
    %1437 = vmatprep.subr.mxu0 %v1291
    %1438 = vmatpush1.msra.mxu0 %v1290
    %1439 = vmatprep.subr.mxu0 %v1293
    %1440 = vmatpush1.msra.mxu0 %v1292
    %1441 = vmatprep.subr.mxu0 %v1295
    %1442 = vmatpush1.msra.mxu0 %v1294
    %1443 = vmatprep.subr.mxu0 %v1297
    %1444 = vmatpush1.msra.mxu0 %v1296
    %1445 = vmatprep.subr.mxu0 %v1299
    %1446 = vmatpush1.msra.mxu0 %v1298
    %1447 = vmatprep.subr.mxu0 %v1301
    %1448 = vmatpush1.msra.mxu0 %v1300
    %1449 = vmatprep.subr.mxu0 %v1303
    %1450 = vmatpush1.msra.mxu0 %v1302
    %1451 = vmatprep.subr.mxu0 %v1305
    %1452 = vmatpush1.msra.mxu0 %v1304
    %1453 = vmatprep.subr.mxu0 %v1307
    %1454 = vmatpush1.msra.mxu0 %v1306
    %1455 = vmatprep.subr.mxu0 %v1309
    %1456 = vmatpush1.msra.mxu0 %v1308
    %1457 = vmatprep.subr.mxu0 %v1311
    %1458 = vmatpush1.msra.mxu0 %v1310
    %1459 = vmatprep.subr.mxu0 %v1313
    %1460 = vmatpush1.msra.mxu0 %v1312
    %1461 = vmatprep.subr.mxu0 %v1315
    %1462 = vmatpush1.msra.mxu0 %v1314
    %1463 = vmatprep.subr.mxu0 %v1317
    %1464 = vmatpush1.msra.mxu0 %v1316
    %1465 = vmatprep.subr.mxu0 %v1319
    %1466 = vmatpush1.msra.mxu0 %v1318
    %1467 = vmatprep.subr.mxu0 %v1321
    %1468 = vmatpush1.msra.mxu0 %v1320
    %1469 = vmatprep.subr.mxu0 %v1323
    %1470 = vmatpush1.msra.mxu0 %v1322
    %1471 = vmatprep.subr.mxu0 %v1325
    %1472 = vmatpush1.msra.mxu0 %v1324
    %1473 = vmatprep.subr.mxu0 %v1327
    %1474 = vmatpush1.msra.mxu0 %v1326
    %1475 = vmatprep.subr.mxu0 %v1329
    %1476 = vmatpush1.msra.mxu0 %v1328
    %1477 = vmatprep.subr.mxu0 %v1331
    %1478 = vmatpush1.msra.mxu0 %v1330
    %1479 = vmatprep.subr.mxu0 %v1333
    %1480 = vmatpush1.msra.mxu0 %v1332
    %1481 = vmatprep.subr.mxu0 %v1335
    %1482 = vmatpush1.msra.mxu0 %v1334
    %1483 = vmatprep.subr.mxu0 %v1337
    %1484 = vmatpush1.msra.mxu0 %v1336
    %1485 = vmatprep.subr.mxu0 %v1339
    %1486 = vmatpush1.msra.mxu0 %v1338
    %1487 = vmatprep.subr.mxu0 %v1341
    %1488 = vmatpush1.msra.mxu0 %v1340
    %1489 = vmatprep.subr.mxu0 %v1343
    %1490 = vmatpush1.msra.mxu0 %v1342
    %1491 = vmatprep.mubr.f32.mxu0 %v1215
    %1492 = vmatmul.mubr.f32.gmra.mrb[0].mxu0 %v1214
    %v1493 = vpop.f32.mrb[0].mxu0
    %v1494 = vadd.f32 %v1423, %v1493
    %v1495 = vpop.f32.mrb[0].mxu0
    %v1496 = vadd.f32 %v1425, %v1495
    %1497 = vdwg.mxu0
    %v1498 = vmax.f32 %v1494, 0.0
    %v1499 = vmax.f32 %v1496, 0.0
    %v1500 = vld [vmem:[#allocation9] sm:$0xff]
    %v1501 = vld [vmem:[#allocation9 + $0x8] sm:$0xff]
    %v1502 = vld [vmem:[#allocation9 + $0x10] sm:$0xff]
    %v1503 = vld [vmem:[#allocation9 + $0x18] sm:$0xff]
    %v1504 = vld [vmem:[#allocation9 + $0x20] sm:$0xff]
    %v1505 = vld [vmem:[#allocation9 + $0x28] sm:$0xff]
    %v1506 = vld [vmem:[#allocation9 + $0x30] sm:$0xff]
    %v1507 = vld [vmem:[#allocation9 + $0x38] sm:$0xff]
    %v1508 = vld [vmem:[#allocation9 + $0x40] sm:$0xff]
    %v1509 = vld [vmem:[#allocation9 + $0x48] sm:$0xff]
    %v1510 = vld [vmem:[#allocation9 + $0x50] sm:$0xff]
    %v1511 = vld [vmem:[#allocation9 + $0x58] sm:$0xff]
    %v1512 = vld [vmem:[#allocation9 + $0x60] sm:$0xff]
    %v1513 = vld [vmem:[#allocation9 + $0x68] sm:$0xff]
    %v1514 = vld [vmem:[#allocation9 + $0x70] sm:$0xff]
    %v1515 = vld [vmem:[#allocation9 + $0x78] sm:$0xff]
    %v1516 = vld [vmem:[#allocation9 + $0x80] sm:$0xff]
    %v1517 = vld [vmem:[#allocation9 + $0x88] sm:$0xff]
    %v1518 = vld [vmem:[#allocation9 + $0x90] sm:$0xff]
    %v1519 = vld [vmem:[#allocation9 + $0x98] sm:$0xff]
    %v1520 = vld [vmem:[#allocation9 + $0xa0] sm:$0xff]
    %v1521 = vld [vmem:[#allocation9 + $0xa8] sm:$0xff]
    %v1522 = vld [vmem:[#allocation9 + $0xb0] sm:$0xff]
    %v1523 = vld [vmem:[#allocation9 + $0xb8] sm:$0xff]
    %v1524 = vld [vmem:[#allocation9 + $0xc0] sm:$0xff]
    %v1525 = vld [vmem:[#allocation9 + $0xc8] sm:$0xff]
    %v1526 = vld [vmem:[#allocation9 + $0xd0] sm:$0xff]
    %v1527 = vld [vmem:[#allocation9 + $0xd8] sm:$0xff]
    %v1528 = vld [vmem:[#allocation9 + $0xe0] sm:$0xff]
    %v1529 = vld [vmem:[#allocation9 + $0xe8] sm:$0xff]
    %v1530 = vld [vmem:[#allocation9 + $0xf0] sm:$0xff]
    %v1531 = vld [vmem:[#allocation9 + $0xf8] sm:$0xff]
    %v1532 = vld [vmem:[#allocation10] sm:$0x1]
    %v1534 = vlaneseq
    %v1535 = vshrl.u32 %v1534, 7
    %v1536 = vsub.s32 0, %v1535
    %v1537 = vrot.slane %v1532, %v1536
    %1539 = vmatprep.subr.mxu0 0.0
    %1540 = vmatpush1.msra.mxu0 %v1500
    %1541 = vmatprep.subr.mxu0 0.0
    %1542 = vmatpush1.msra.mxu0 %v1501
    %1543 = vmatprep.subr.mxu0 0.0
    %1544 = vmatpush1.msra.mxu0 %v1502
    %1545 = vmatprep.subr.mxu0 0.0
    %1546 = vmatpush1.msra.mxu0 %v1503
    %1547 = vmatprep.subr.mxu0 0.0
    %1548 = vmatpush1.msra.mxu0 %v1504
    %1549 = vmatprep.subr.mxu0 0.0
    %1550 = vmatpush1.msra.mxu0 %v1505
    %1551 = vmatprep.subr.mxu0 0.0
    %1552 = vmatpush1.msra.mxu0 %v1506
    %1553 = vmatprep.subr.mxu0 0.0
    %1554 = vmatpush1.msra.mxu0 %v1507
    %1555 = vmatprep.subr.mxu0 0.0
    %1556 = vmatpush1.msra.mxu0 %v1508
    %1557 = vmatprep.subr.mxu0 0.0
    %1558 = vmatpush1.msra.mxu0 %v1509
    %1559 = vmatprep.subr.mxu0 0.0
    %1560 = vmatpush1.msra.mxu0 %v1510
    %1561 = vmatprep.subr.mxu0 0.0
    %1562 = vmatpush1.msra.mxu0 %v1511
    %1563 = vmatprep.subr.mxu0 0.0
    %1564 = vmatpush1.msra.mxu0 %v1512
    %1565 = vmatprep.subr.mxu0 0.0
    %1566 = vmatpush1.msra.mxu0 %v1513
    %1567 = vmatprep.subr.mxu0 0.0
    %1568 = vmatpush1.msra.mxu0 %v1514
    %1569 = vmatprep.subr.mxu0 0.0
    %1570 = vmatpush1.msra.mxu0 %v1515
    %1571 = vmatprep.subr.mxu0 0.0
    %1572 = vmatpush1.msra.mxu0 %v1516
    %1573 = vmatprep.subr.mxu0 0.0
    %1574 = vmatpush1.msra.mxu0 %v1517
    %1575 = vmatprep.subr.mxu0 0.0
    %1576 = vmatpush1.msra.mxu0 %v1518
    %1577 = vmatprep.subr.mxu0 0.0
    %1578 = vmatpush1.msra.mxu0 %v1519
    %1579 = vmatprep.subr.mxu0 0.0
    %1580 = vmatpush1.msra.mxu0 %v1520
    %1581 = vmatprep.subr.mxu0 0.0
    %1582 = vmatpush1.msra.mxu0 %v1521
    %1583 = vmatprep.subr.mxu0 0.0
    %1584 = vmatpush1.msra.mxu0 %v1522
    %1585 = vmatprep.subr.mxu0 0.0
    %1586 = vmatpush1.msra.mxu0 %v1523
    %1587 = vmatprep.subr.mxu0 0.0
    %1588 = vmatpush1.msra.mxu0 %v1524
    %1589 = vmatprep.subr.mxu0 0.0
    %1590 = vmatpush1.msra.mxu0 %v1525
    %1591 = vmatprep.subr.mxu0 0.0
    %1592 = vmatpush1.msra.mxu0 %v1526
    %1593 = vmatprep.subr.mxu0 0.0
    %1594 = vmatpush1.msra.mxu0 %v1527
    %1595 = vmatprep.subr.mxu0 0.0
    %1596 = vmatpush1.msra.mxu0 %v1528
    %1597 = vmatprep.subr.mxu0 0.0
    %1598 = vmatpush1.msra.mxu0 %v1529
    %1599 = vmatprep.subr.mxu0 0.0
    %1600 = vmatpush1.msra.mxu0 %v1530
    %1601 = vmatprep.subr.mxu0 0.0
    %1602 = vmatpush1.msra.mxu0 %v1531
    %1603 = vmatprep.mubr.f32.mxu0 %v1499
    %1604 = vmatmul.mubr.f32.gmra.mrb[0].mxu0 %v1498
    %v1605 = vpop.f32.mrb[0].mxu0
    %v1606 = vadd.f32 %v1537, %v1605
    %v1607 = vpop.f32.mrb[0].mxu0
    %1608 = vdwg.mxu0
    %v1609 = vmax.f32 %v1606, 0.0
    %1610 = vst [vmem:[%s7] sm:$0xff] %v1609
    // Predicated region
    $region54: #{_encoder_apply.1} parent=1 // pred_check
      _
    $region55: #{_encoder_apply.1} parent=1 // pred_check_branch
      %1612 = sbr.rel (0) target = $region57
    $region56: #{_encoder_apply.1} parent=1 // pred_region
      _
    $region57: #{_encoder_apply.1} parent=1 // pred_fallthru
      _
    // Predicated region
    $region58: #{_encoder_apply.1} parent=1 // pred_check
      _
    $region59: #{_encoder_apply.1} parent=1 // pred_check_branch
      %1614 = sbr.rel (0) target = $region61
    $region60: #{_encoder_apply.1} parent=1 // pred_region
      _
    $region61: #{_encoder_apply.1} parent=1 // pred_fallthru
      _
    %1615 = vsyncpa [#allocation3], 1
    %1616 = vsyncpa [#allocation5], 1
    %1617 = vsyncpa [#allocation8], 1
    %1618 = vsyncpa [#allocation11], 1

</llo_original>
